<compile_context>
chip_gen: v5e
topology: v5e:2x2
jax: 0.10.0
libtpu: 0.0.40
codegen_flags: <defaults>
</compile_context>

<pallas_src>
import numpy as np
import jax
import jax.numpy as jnp
from jax.experimental import pallas as pl
from jax.experimental.pallas import tpu as pltpu

# ----- config (small shapes consistent with the module's constructor) -----
B, S, F = 2, 16, 4        # batch, seq_len, num_features
FPAD = 8                  # features zero-padded to 8 lanes in the wrapper
D, H = 32, 4              # n_dim_model, num_heads
HD = D // H               # head dim
L = 2                     # num_encoder_layers
DFF = 64                  # encoder-layer feed-forward dim
FC = 64                   # MLP-head hidden dim
OUT = 7                   # output_dim
EPS = 1e-5                # LayerNorm eps (PyTorch default)
LANE = 128                # lane width of the packed slabs / output slab

# ----- dense packed-weight layout (bf16 slab, static offsets) --------------
# Row offsets are multiples of 16 (bf16 sublane-pack group) for aligned loads.
R_EMB = 0                                  # rows 0:8 used: emb_w (FPAD, D)
LAYER_ROWS = 128
def R_QKVO(l): return 16 + l * LAYER_ROWS  # 32 rows: wq|wk|wv|wo, each (D, D)
def R_F1(l):   return R_QKVO(l) + 32       # 32 rows: f1w (D, DFF) in lanes 0:DFF
def R_F2(l):   return R_QKVO(l) + 64       # 64 rows: f2w (DFF, D) in lanes 0:D
R_FC1 = 16 + L * LAYER_ROWS                # 32 rows: fc1w (D, FC)
R_FC2 = R_FC1 + 32                         # 64 rows: fc2w (FC, 128) zero-padded
TOTAL_ROWS = R_FC2 + FC                    # 368 (multiple of 16)

# ----- bias / LayerNorm-param slab (f32, one 128-wide row each) -------------
def v_base(l): return 7 * l                # per layer: qkvo-bias, n1g, n1b, f1b, f2b, n2g, n2b
V_FNG = 7 * L
V_FNB = V_FNG + 1
V_FC1 = V_FNB + 1
V_FC2 = V_FC1 + 1
NV = V_FC2 + 1


def _ln(x, g, b):
    mu = jnp.mean(x, axis=-1, keepdims=True)
    var = jnp.mean((x - mu) ** 2, axis=-1, keepdims=True)
    return (x - mu) * jax.lax.rsqrt(var + EPS) * g + b


# --------------------------- Pallas kernel ---------------------------------
def encoder_kernel(src_ref, peb_ref, mats_ref, vecs_ref, out_ref):
    # src_ref: (S, FPAD) f32     peb_ref: (S, D) f32  (PE[batch] + emb bias)
    # mats_ref: (TOTAL_ROWS, 128) bf16    vecs_ref: (NV, 128) f32
    # out_ref: (S, 128) f32
    f32 = jnp.float32

    def wdot(a, r0, nrows, c0=0, ncols=LANE):
        # activation cast to bf16 only at the weight matmul; f32 accumulate
        return jnp.dot(a.astype(jnp.bfloat16),
                       mats_ref[r0:r0 + nrows, c0:c0 + ncols],
                       preferred_element_type=f32)

    # feature embedding; PE (batch-indexed quirk) + embedding bias pre-added in wrapper
    h = wdot(src_ref[...], R_EMB, FPAD, 0, D) + peb_ref[...]        # (S, D)
    # dropout (p=0.1) is identity in eval mode

    for l in range(L):                                   # post-norm encoder layers
        rq, vb = R_QKVO(l), v_base(l)

        # one lane-dense fused projection: output lanes = q | k | v | (unused wo pass)
        qkv = wdot(h, rq, D) + vecs_ref[vb:vb + 1, :]               # (S, 128)
        q = qkv[:, 0:D]          # score scale already folded into wq / bq
        k = qkv[:, D:2 * D]
        v = qkv[:, 2 * D:3 * D]

        heads = []
        for hh in range(H):                               # flat 2-D per-head matmuls
            lo = hh * HD
            qh, kh, vh = q[:, lo:lo + HD], k[:, lo:lo + HD], v[:, lo:lo + HD]
            s = jax.lax.dot_general(qh, kh, (((1,), (1,)), ((), ())),
                                    preferred_element_type=f32)      # (S, S)
            s = s - jnp.max(s, axis=-1, keepdims=True)
            e = jnp.exp(s)
            p = e * pl.reciprocal(jnp.sum(e, axis=-1, keepdims=True), approx=True)
            heads.append(jnp.dot(p, vh, preferred_element_type=f32))  # (S, HD)
        ctx = jnp.concatenate(heads, axis=-1)                         # (S, D)

        # out-projection: lanes 96:128 of the same packed tile
        attn = wdot(ctx, rq, D, 3 * D, D) + vecs_ref[vb:vb + 1, 3 * D:4 * D]
        h = _ln(h + attn, vecs_ref[vb + 1:vb + 2, :D], vecs_ref[vb + 2:vb + 3, :D])

        ff = jnp.maximum(wdot(h, R_F1(l), D, 0, DFF)
                         + vecs_ref[vb + 3:vb + 4, :DFF], 0.0)        # relu
        ff = wdot(ff, R_F2(l), DFF, 0, D) + vecs_ref[vb + 4:vb + 5, :D]
        h = _ln(h + ff, vecs_ref[vb + 5:vb + 6, :D], vecs_ref[vb + 6:vb + 7, :D])

    # final encoder LayerNorm
    h = _ln(h, vecs_ref[V_FNG:V_FNG + 1, :D], vecs_ref[V_FNB:V_FNB + 1, :D])

    # MLP head: Linear(D, FC) -> relu -> Linear(FC, 128-padded OUT)
    y = jnp.maximum(wdot(h, R_FC1, D, 0, FC) + vecs_ref[V_FC1:V_FC1 + 1, :FC], 0.0)
    y = wdot(y, R_FC2, FC, 0, LANE) + vecs_ref[V_FC2:V_FC2 + 1, :]
    out_ref[...] = y                                     # lane-dense (S, 128) store


def transformer_encoder(src, pe_slice, emb_b, mats, vecs):
    """src: (B,S,F), pe_slice: (B,1,D), emb_b: (D,), mats: (TOTAL_ROWS,128) bf16,
    vecs: (NV,128) f32."""
    # layout plumbing stays in XLA (free): flatten, pad features, pre-broadcast PE
    src_flat = jnp.pad(src.reshape(B * S, F), ((0, 0), (0, FPAD - F)))
    peb = (pe_slice + emb_b).astype(jnp.float32)                 # (B, 1, D) quirk
    peb = jnp.broadcast_to(peb, (B, S, D)).reshape(B * S, D)

    grid_spec = pltpu.PrefetchScalarGridSpec(
        num_scalar_prefetch=0,
        grid=(B,),                                               # one batch per grid step
        in_specs=[
            pl.BlockSpec((S, FPAD), lambda b: (b, 0)),
            pl.BlockSpec((S, D), lambda b: (b, 0)),
            pl.BlockSpec((TOTAL_ROWS, LANE), lambda b: (0, 0)),  # weights stay resident
            pl.BlockSpec((NV, LANE), lambda b: (0, 0)),
        ],
        out_specs=pl.BlockSpec((S, LANE), lambda b: (b, 0)),
    )
    out = pl.pallas_call(
        encoder_kernel,
        out_shape=jax.ShapeDtypeStruct((B * S, LANE), jnp.float32),
        grid_spec=grid_spec,
        compiler_params=pltpu.CompilerParams(
            dimension_semantics=("parallel",)),                  # v7x: one batch per TC
    )(src_flat, peb, mats, vecs)
    return out[:, :OUT].reshape(B, S, OUT)


# --------------------------- parameter handling -----------------------------
def init_params(key):
    keys = iter(jax.random.split(key, 64))

    def dense(shape, fan_in, scale=1.0):
        return (scale / np.sqrt(fan_in)) * jax.random.normal(
            next(keys), shape, dtype=jnp.float32)

    layers = []
    for _ in range(L):
        layers.append(dict(
            wq=dense((D, D), D), bq=dense((D,), D, 0.1),
            wk=dense((D, D), D), bk=dense((D,), D, 0.1),
            wv=dense((D, D), D), bv=dense((D,), D, 0.1),
            wo=dense((D, D), D), bo=dense((D,), D, 0.1),
            n1g=jnp.ones((D,), jnp.float32), n1b=jnp.zeros((D,), jnp.float32),
            f1w=dense((D, DFF), D), f1b=dense((DFF,), D, 0.1),
            f2w=dense((DFF, D), DFF), f2b=dense((D,), DFF, 0.1),
            n2g=jnp.ones((D,), jnp.float32), n2b=jnp.zeros((D,), jnp.float32),
        ))
    return dict(
        emb_w=dense((F, D), F), emb_b=dense((D,), F, 0.1),
        layers=layers,
        fng=jnp.ones((D,), jnp.float32), fnb=jnp.zeros((D,), jnp.float32),
        fc1w=dense((D, FC), D), fc1b=dense((FC,), D, 0.1),
        fc2w=dense((FC, OUT), FC), fc2b=dense((OUT,), FC, 0.1),
    )


def quantize_weight_matrices(p):
    """Round all weight MATRICES to bf16 (and back to f32) once, so the bf16 weight
    slab used by the kernel and the f32 reference share identical weight values."""
    def q(x): return jnp.asarray(x, jnp.bfloat16).astype(jnp.float32)
    p = dict(p)
    p['emb_w'], p['fc1w'], p['fc2w'] = q(p['emb_w']), q(p['fc1w']), q(p['fc2w'])
    layers = []
    for lp in p['layers']:
        lp = dict(lp)
        for k in ('wq', 'wk', 'wv', 'wo', 'f1w', 'f2w'):
            lp[k] = q(lp[k])
        layers.append(lp)
    p['layers'] = layers
    return p


def pack_params(p):
    """Pack weights into one dense bf16 matrix slab + one small f32 bias slab."""
    mats = np.zeros((TOTAL_ROWS, LANE), np.float32)
    vecs = np.zeros((NV, LANE), np.float32)
    scale = 1.0 / np.sqrt(HD)                      # folded attention score scale

    mats[0:F, 0:D] = np.asarray(p['emb_w'])
    for l in range(L):
        lp = p['layers'][l]
        r, vb = R_QKVO(l), v_base(l)
        mats[r:r + D, 0:D]         = np.asarray(lp['wq']) * scale
        mats[r:r + D, D:2 * D]     = np.asarray(lp['wk'])
        mats[r:r + D, 2 * D:3 * D] = np.asarray(lp['wv'])
        mats[r:r + D, 3 * D:4 * D] = np.asarray(lp['wo'])
        mats[R_F1(l):R_F1(l) + D, 0:DFF]   = np.asarray(lp['f1w'])
        mats[R_F2(l):R_F2(l) + DFF, 0:D]   = np.asarray(lp['f2w'])
        vecs[vb, 0:D]         = np.asarray(lp['bq']) * scale
        vecs[vb, D:2 * D]     = np.asarray(lp['bk'])
        vecs[vb, 2 * D:3 * D] = np.asarray(lp['bv'])
        vecs[vb, 3 * D:4 * D] = np.asarray(lp['bo'])
        vecs[vb + 1, :D] = np.asarray(lp['n1g']); vecs[vb + 2, :D] = np.asarray(lp['n1b'])
        vecs[vb + 3, :DFF] = np.asarray(lp['f1b']); vecs[vb + 4, :D] = np.asarray(lp['f2b'])
        vecs[vb + 5, :D] = np.asarray(lp['n2g']); vecs[vb + 6, :D] = np.asarray(lp['n2b'])
    vecs[V_FNG, :D] = np.asarray(p['fng']); vecs[V_FNB, :D] = np.asarray(p['fnb'])
    mats[R_FC1:R_FC1 + D, :FC] = np.asarray(p['fc1w']); vecs[V_FC1, :FC] = np.asarray(p['fc1b'])
    mats[R_FC2:R_FC2 + FC, :OUT] = np.asarray(p['fc2w']); vecs[V_FC2, :OUT] = np.asarray(p['fc2b'])
    return jnp.asarray(mats, jnp.bfloat16), jnp.asarray(vecs, jnp.float32)


def sinusoidal_pe(max_len, dim):
    position = np.arange(max_len, dtype=np.float32)[:, None]
    div_term = np.exp(np.arange(0, dim, 2, dtype=np.float32) * (-np.log(10000.0) / dim))
    pe = np.zeros((max_len, dim), dtype=np.float32)
    pe[:, 0::2] = np.sin(position * div_term)
    pe[:, 1::2] = np.cos(position * div_term)
    return pe[:, None, :]          # (max_len, 1, dim) — same buffer layout as PyTorch


# --------------------------- independent reference --------------------------
def ref_forward(src, pe_slice, p):
    """Pure-JAX f32 reference following the PyTorch module directly (standard MHA
    head transposes, explicit score scale, exact softmax divide)."""
    x = src @ p['emb_w'] + p['emb_b']                 # (B, S, D)
    x = x + pe_slice                                  # PE quirk (batch-indexed rows)
    for l in range(L):
        lp = p['layers'][l]
        q = (x @ lp['wq'] + lp['bq']).reshape(B, S, H, HD).transpose(0, 2, 1, 3)
        k = (x @ lp['wk'] + lp['bk']).reshape(B, S, H, HD).transpose(0, 2, 1, 3)
        v = (x @ lp['wv'] + lp['bv']).reshape(B, S, H, HD).transpose(0, 2, 1, 3)
        s = jnp.einsum('bhqd,bhkd->bhqk', q, k) / np.sqrt(HD)
        a = jax.nn.softmax(s, axis=-1)
        ctx = jnp.einsum('bhqk,bhkd->bhqd', a, v).transpose(0, 2, 1, 3).reshape(B, S, D)
        attn = ctx @ lp['wo'] + lp['bo']
        x = _ln(x + attn, lp['n1g'], lp['n1b'])
        ff = jax.nn.relu(x @ lp['f1w'] + lp['f1b'])
        ff = ff @ lp['f2w'] + lp['f2b']
        x = _ln(x + ff, lp['n2g'], lp['n2b'])
    x = _ln(x, p['fng'], p['fnb'])
    y = jax.nn.relu(x @ p['fc1w'] + p['fc1b'])
    return y @ p['fc2w'] + p['fc2b']


if __name__ == "__main__":
    key = jax.random.PRNGKey(0)
    pkey, xkey = jax.random.split(key)
    params = init_params(pkey)
    params = quantize_weight_matrices(params)     # shared bf16-rounded weights
    mats, vecs = pack_params(params)

    src = jax.random.normal(xkey, (B, S, F), dtype=jnp.float32)
    pe_slice = jnp.asarray(sinusoidal_pe(5000, D)[:B])    # (B, 1, D) — batch-indexed quirk

    out = transformer_encoder(src, pe_slice, params['emb_b'], mats, vecs)
    out = jax.block_until_ready(out)

    ref = ref_forward(src, pe_slice, params)
    # tolerance covers bf16 activation casts at the weight matmuls, the folded
    # (re-rounded) score scale, and the EUP approximate reciprocal in softmax
    np.testing.assert_allclose(np.asarray(out), np.asarray(ref), rtol=2e-2, atol=2e-2)
    assert out.shape == (B, S, OUT)
    print("KERNEL_OK")
</pallas_src>

<mosaic_0001>
module attributes {stable_mosaic.version = 11 : i64} {
  func.func @encoder_kernel(%arg0: i32, %arg1: memref<16x8xf32, #tpu.memory_space<vmem>>, %arg2: memref<16x32xf32, #tpu.memory_space<vmem>>, %arg3: memref<368x128xbf16, #tpu.memory_space<vmem>>, %arg4: memref<18x128xf32, #tpu.memory_space<vmem>>, %arg5: memref<16x128xf32, #tpu.memory_space<vmem>>) attributes {dimension_semantics = [#tpu.dimension_semantics<parallel>], iteration_bounds = array<i64: 2>, scalar_prefetch = 0 : i64, scratch_operands = 0 : i64, tpu.core_type = #tpu.core_type<tc>, window_params = [{transform_indices = @transform_0, window_bounds = array<i64: 16, 8>}, {transform_indices = @transform_1, window_bounds = array<i64: 16, 32>}, {pipeline_mode = #tpu.pipeline_mode<synchronous>, transform_indices = @transform_2, window_bounds = array<i64: 368, 128>}, {pipeline_mode = #tpu.pipeline_mode<synchronous>, transform_indices = @transform_3, window_bounds = array<i64: 18, 128>}, {transform_indices = @transform_4, window_bounds = array<i64: 16, 128>}]} {
    %c0 = arith.constant 0 : index
    %c0_0 = arith.constant 0 : index
    %0 = vector.load %arg1[%c0, %c0_0] : memref<16x8xf32, #tpu.memory_space<vmem>>, vector<16x8xf32>
    %1 = arith.truncf %0 : vector<16x8xf32> to vector<16x8xbf16>
    %c0_1 = arith.constant 0 : index
    %c0_2 = arith.constant 0 : index
    %2 = vector.load %arg3[%c0_1, %c0_2] : memref<368x128xbf16, #tpu.memory_space<vmem>>, vector<8x32xbf16>
    %cst = arith.constant dense<0.000000e+00> : vector<16x32xf32>
    %3 = tpu.matmul %1, %2, %cst {dimension_numbers = #tpu.dot_dimension_numbers<[1], [0], [0], [1], [0, 0, 1, 1], [], []>} : vector<16x8xbf16>, vector<8x32xbf16>, vector<16x32xf32> -> vector<16x32xf32>
    %c0_3 = arith.constant 0 : index
    %c0_4 = arith.constant 0 : index
    %4 = vector.load %arg2[%c0_3, %c0_4] : memref<16x32xf32, #tpu.memory_space<vmem>>, vector<16x32xf32>
    %5 = arith.addf %3, %4 : vector<16x32xf32>
    %6 = arith.truncf %5 : vector<16x32xf32> to vector<16x32xbf16>
    %c16 = arith.constant 16 : index
    %c0_5 = arith.constant 0 : index
    %7 = vector.load %arg3[%c16, %c0_5] : memref<368x128xbf16, #tpu.memory_space<vmem>>, vector<32x128xbf16>
    %cst_6 = arith.constant dense<0.000000e+00> : vector<16x128xf32>
    %8 = tpu.matmul %6, %7, %cst_6 {dimension_numbers = #tpu.dot_dimension_numbers<[1], [0], [0], [1], [0, 0, 1, 1], [], []>} : vector<16x32xbf16>, vector<32x128xbf16>, vector<16x128xf32> -> vector<16x128xf32>
    %c0_7 = arith.constant 0 : index
    %c0_8 = arith.constant 0 : index
    %9 = vector.load %arg4[%c0_7, %c0_8] : memref<18x128xf32, #tpu.memory_space<vmem>>, vector<1x128xf32>
    %10 = vector.broadcast %9 : vector<1x128xf32> to vector<16x128xf32>
    %11 = arith.addf %8, %10 : vector<16x128xf32>
    %12 = vector.extract_strided_slice %11 {offsets = [0, 0], sizes = [16, 32], strides = [1, 1]} : vector<16x128xf32> to vector<16x32xf32>
    %13 = vector.extract_strided_slice %11 {offsets = [0, 32], sizes = [16, 32], strides = [1, 1]} : vector<16x128xf32> to vector<16x32xf32>
    %14 = vector.extract_strided_slice %11 {offsets = [0, 64], sizes = [16, 32], strides = [1, 1]} : vector<16x128xf32> to vector<16x32xf32>
    %15 = vector.extract_strided_slice %12 {offsets = [0, 0], sizes = [16, 8], strides = [1, 1]} : vector<16x32xf32> to vector<16x8xf32>
    %16 = vector.extract_strided_slice %13 {offsets = [0, 0], sizes = [16, 8], strides = [1, 1]} : vector<16x32xf32> to vector<16x8xf32>
    %17 = vector.extract_strided_slice %14 {offsets = [0, 0], sizes = [16, 8], strides = [1, 1]} : vector<16x32xf32> to vector<16x8xf32>
    %cst_9 = arith.constant dense<0.000000e+00> : vector<16x16xf32>
    %18 = tpu.matmul %15, %16, %cst_9 {dimension_numbers = #tpu.dot_dimension_numbers<[1], [1], [0], [0], [0, 0, 1, 0], [], []>} : vector<16x8xf32>, vector<16x8xf32>, vector<16x16xf32> -> vector<16x16xf32>
    %cst_10 = arith.constant dense<0xFF800000> : vector<16xf32>
    %19 = vector.multi_reduction <maximumf>, %18, %cst_10 [1] : vector<16x16xf32> to vector<16xf32>
    %20 = vector.shape_cast %19 : vector<16xf32> to vector<16x1xf32>
    %21 = vector.broadcast %20 : vector<16x1xf32> to vector<16x16xf32>
    %22 = arith.subf %18, %21 : vector<16x16xf32>
    %23 = math.exp %22 : vector<16x16xf32>
    %cst_11 = arith.constant dense<0.000000e+00> : vector<16xf32>
    %24 = vector.multi_reduction <add>, %23, %cst_11 [1] : vector<16x16xf32> to vector<16xf32>
    %25 = vector.shape_cast %24 : vector<16xf32> to vector<16x1xf32>
    %26 = tpu.reciprocal %25 {approx = true} : vector<16x1xf32> -> vector<16x1xf32>
    %27 = vector.broadcast %26 : vector<16x1xf32> to vector<16x16xf32>
    %28 = arith.mulf %23, %27 : vector<16x16xf32>
    %cst_12 = arith.constant dense<0.000000e+00> : vector<16x8xf32>
    %29 = tpu.matmul %28, %17, %cst_12 {dimension_numbers = #tpu.dot_dimension_numbers<[1], [0], [0], [1], [0, 0, 1, 1], [], []>} : vector<16x16xf32>, vector<16x8xf32>, vector<16x8xf32> -> vector<16x8xf32>
    %30 = vector.extract_strided_slice %12 {offsets = [0, 8], sizes = [16, 8], strides = [1, 1]} : vector<16x32xf32> to vector<16x8xf32>
    %31 = vector.extract_strided_slice %13 {offsets = [0, 8], sizes = [16, 8], strides = [1, 1]} : vector<16x32xf32> to vector<16x8xf32>
    %32 = vector.extract_strided_slice %14 {offsets = [0, 8], sizes = [16, 8], strides = [1, 1]} : vector<16x32xf32> to vector<16x8xf32>
    %cst_13 = arith.constant dense<0.000000e+00> : vector<16x16xf32>
    %33 = tpu.matmul %30, %31, %cst_13 {dimension_numbers = #tpu.dot_dimension_numbers<[1], [1], [0], [0], [0, 0, 1, 0], [], []>} : vector<16x8xf32>, vector<16x8xf32>, vector<16x16xf32> -> vector<16x16xf32>
    %cst_14 = arith.constant dense<0xFF800000> : vector<16xf32>
    %34 = vector.multi_reduction <maximumf>, %33, %cst_14 [1] : vector<16x16xf32> to vector<16xf32>
    %35 = vector.shape_cast %34 : vector<16xf32> to vector<16x1xf32>
    %36 = vector.broadcast %35 : vector<16x1xf32> to vector<16x16xf32>
    %37 = arith.subf %33, %36 : vector<16x16xf32>
    %38 = math.exp %37 : vector<16x16xf32>
    %cst_15 = arith.constant dense<0.000000e+00> : vector<16xf32>
    %39 = vector.multi_reduction <add>, %38, %cst_15 [1] : vector<16x16xf32> to vector<16xf32>
    %40 = vector.shape_cast %39 : vector<16xf32> to vector<16x1xf32>
    %41 = tpu.reciprocal %40 {approx = true} : vector<16x1xf32> -> vector<16x1xf32>
    %42 = vector.broadcast %41 : vector<16x1xf32> to vector<16x16xf32>
    %43 = arith.mulf %38, %42 : vector<16x16xf32>
    %cst_16 = arith.constant dense<0.000000e+00> : vector<16x8xf32>
    %44 = tpu.matmul %43, %32, %cst_16 {dimension_numbers = #tpu.dot_dimension_numbers<[1], [0], [0], [1], [0, 0, 1, 1], [], []>} : vector<16x16xf32>, vector<16x8xf32>, vector<16x8xf32> -> vector<16x8xf32>
    %45 = vector.extract_strided_slice %12 {offsets = [0, 16], sizes = [16, 8], strides = [1, 1]} : vector<16x32xf32> to vector<16x8xf32>
    %46 = vector.extract_strided_slice %13 {offsets = [0, 16], sizes = [16, 8], strides = [1, 1]} : vector<16x32xf32> to vector<16x8xf32>
    %47 = vector.extract_strided_slice %14 {offsets = [0, 16], sizes = [16, 8], strides = [1, 1]} : vector<16x32xf32> to vector<16x8xf32>
    %cst_17 = arith.constant dense<0.000000e+00> : vector<16x16xf32>
    %48 = tpu.matmul %45, %46, %cst_17 {dimension_numbers = #tpu.dot_dimension_numbers<[1], [1], [0], [0], [0, 0, 1, 0], [], []>} : vector<16x8xf32>, vector<16x8xf32>, vector<16x16xf32> -> vector<16x16xf32>
    %cst_18 = arith.constant dense<0xFF800000> : vector<16xf32>
    %49 = vector.multi_reduction <maximumf>, %48, %cst_18 [1] : vector<16x16xf32> to vector<16xf32>
    %50 = vector.shape_cast %49 : vector<16xf32> to vector<16x1xf32>
    %51 = vector.broadcast %50 : vector<16x1xf32> to vector<16x16xf32>
    %52 = arith.subf %48, %51 : vector<16x16xf32>
    %53 = math.exp %52 : vector<16x16xf32>
    %cst_19 = arith.constant dense<0.000000e+00> : vector<16xf32>
    %54 = vector.multi_reduction <add>, %53, %cst_19 [1] : vector<16x16xf32> to vector<16xf32>
    %55 = vector.shape_cast %54 : vector<16xf32> to vector<16x1xf32>
    %56 = tpu.reciprocal %55 {approx = true} : vector<16x1xf32> -> vector<16x1xf32>
    %57 = vector.broadcast %56 : vector<16x1xf32> to vector<16x16xf32>
    %58 = arith.mulf %53, %57 : vector<16x16xf32>
    %cst_20 = arith.constant dense<0.000000e+00> : vector<16x8xf32>
    %59 = tpu.matmul %58, %47, %cst_20 {dimension_numbers = #tpu.dot_dimension_numbers<[1], [0], [0], [1], [0, 0, 1, 1], [], []>} : vector<16x16xf32>, vector<16x8xf32>, vector<16x8xf32> -> vector<16x8xf32>
    %60 = vector.extract_strided_slice %12 {offsets = [0, 24], sizes = [16, 8], strides = [1, 1]} : vector<16x32xf32> to vector<16x8xf32>
    %61 = vector.extract_strided_slice %13 {offsets = [0, 24], sizes = [16, 8], strides = [1, 1]} : vector<16x32xf32> to vector<16x8xf32>
    %62 = vector.extract_strided_slice %14 {offsets = [0, 24], sizes = [16, 8], strides = [1, 1]} : vector<16x32xf32> to vector<16x8xf32>
    %cst_21 = arith.constant dense<0.000000e+00> : vector<16x16xf32>
    %63 = tpu.matmul %60, %61, %cst_21 {dimension_numbers = #tpu.dot_dimension_numbers<[1], [1], [0], [0], [0, 0, 1, 0], [], []>} : vector<16x8xf32>, vector<16x8xf32>, vector<16x16xf32> -> vector<16x16xf32>
    %cst_22 = arith.constant dense<0xFF800000> : vector<16xf32>
    %64 = vector.multi_reduction <maximumf>, %63, %cst_22 [1] : vector<16x16xf32> to vector<16xf32>
    %65 = vector.shape_cast %64 : vector<16xf32> to vector<16x1xf32>
    %66 = vector.broadcast %65 : vector<16x1xf32> to vector<16x16xf32>
    %67 = arith.subf %63, %66 : vector<16x16xf32>
    %68 = math.exp %67 : vector<16x16xf32>
    %cst_23 = arith.constant dense<0.000000e+00> : vector<16xf32>
    %69 = vector.multi_reduction <add>, %68, %cst_23 [1] : vector<16x16xf32> to vector<16xf32>
    %70 = vector.shape_cast %69 : vector<16xf32> to vector<16x1xf32>
    %71 = tpu.reciprocal %70 {approx = true} : vector<16x1xf32> -> vector<16x1xf32>
    %72 = vector.broadcast %71 : vector<16x1xf32> to vector<16x16xf32>
    %73 = arith.mulf %68, %72 : vector<16x16xf32>
    %cst_24 = arith.constant dense<0.000000e+00> : vector<16x8xf32>
    %74 = tpu.matmul %73, %62, %cst_24 {dimension_numbers = #tpu.dot_dimension_numbers<[1], [0], [0], [1], [0, 0, 1, 1], [], []>} : vector<16x16xf32>, vector<16x8xf32>, vector<16x8xf32> -> vector<16x8xf32>
    %75 = tpu.concatenate %29, %44, %59, %74 in 1 : vector<16x8xf32>, vector<16x8xf32>, vector<16x8xf32>, vector<16x8xf32> -> vector<16x32xf32>
    %76 = arith.truncf %75 : vector<16x32xf32> to vector<16x32xbf16>
    %c16_25 = arith.constant 16 : index
    %c96 = arith.constant 96 : index
    %77 = vector.load %arg3[%c16_25, %c96] : memref<368x128xbf16, #tpu.memory_space<vmem>>, vector<32x32xbf16>
    %cst_26 = arith.constant dense<0.000000e+00> : vector<16x32xf32>
    %78 = tpu.matmul %76, %77, %cst_26 {dimension_numbers = #tpu.dot_dimension_numbers<[1], [0], [0], [1], [0, 0, 1, 1], [], []>} : vector<16x32xbf16>, vector<32x32xbf16>, vector<16x32xf32> -> vector<16x32xf32>
    %c0_27 = arith.constant 0 : index
    %c96_28 = arith.constant 96 : index
    %79 = vector.load %arg4[%c0_27, %c96_28] : memref<18x128xf32, #tpu.memory_space<vmem>>, vector<1x32xf32>
    %80 = vector.broadcast %79 : vector<1x32xf32> to vector<16x32xf32>
    %81 = arith.addf %78, %80 : vector<16x32xf32>
    %82 = arith.addf %5, %81 : vector<16x32xf32>
    %c1 = arith.constant 1 : index
    %c0_29 = arith.constant 0 : index
    %83 = vector.load %arg4[%c1, %c0_29] : memref<18x128xf32, #tpu.memory_space<vmem>>, vector<1x32xf32>
    %c2 = arith.constant 2 : index
    %c0_30 = arith.constant 0 : index
    %84 = vector.load %arg4[%c2, %c0_30] : memref<18x128xf32, #tpu.memory_space<vmem>>, vector<1x32xf32>
    %cst_31 = arith.constant dense<0.000000e+00> : vector<16xf32>
    %85 = vector.multi_reduction <add>, %82, %cst_31 [1] : vector<16x32xf32> to vector<16xf32>
    %86 = vector.shape_cast %85 : vector<16xf32> to vector<16x1xf32>
    %cst_32 = arith.constant 3.200000e+01 : f32
    %87 = vector.broadcast %cst_32 : f32 to vector<16x1xf32>
    %88 = arith.divf %86, %87 : vector<16x1xf32>
    %89 = vector.broadcast %88 : vector<16x1xf32> to vector<16x32xf32>
    %90 = arith.subf %82, %89 : vector<16x32xf32>
    %91 = arith.mulf %90, %90 : vector<16x32xf32>
    %cst_33 = arith.constant dense<0.000000e+00> : vector<16xf32>
    %92 = vector.multi_reduction <add>, %91, %cst_33 [1] : vector<16x32xf32> to vector<16xf32>
    %93 = vector.shape_cast %92 : vector<16xf32> to vector<16x1xf32>
    %cst_34 = arith.constant 3.200000e+01 : f32
    %94 = vector.broadcast %cst_34 : f32 to vector<16x1xf32>
    %95 = arith.divf %93, %94 : vector<16x1xf32>
    %96 = vector.broadcast %88 : vector<16x1xf32> to vector<16x32xf32>
    %97 = arith.subf %82, %96 : vector<16x32xf32>
    %cst_35 = arith.constant 9.99999974E-6 : f32
    %98 = vector.broadcast %cst_35 : f32 to vector<16x1xf32>
    %99 = arith.addf %95, %98 : vector<16x1xf32>
    %100 = math.rsqrt %99 : vector<16x1xf32>
    %101 = vector.broadcast %100 : vector<16x1xf32> to vector<16x32xf32>
    %102 = arith.mulf %97, %101 : vector<16x32xf32>
    %103 = vector.broadcast %83 : vector<1x32xf32> to vector<16x32xf32>
    %104 = arith.mulf %102, %103 : vector<16x32xf32>
    %105 = vector.broadcast %84 : vector<1x32xf32> to vector<16x32xf32>
    %106 = arith.addf %104, %105 : vector<16x32xf32>
    %107 = arith.truncf %106 : vector<16x32xf32> to vector<16x32xbf16>
    %c48 = arith.constant 48 : index
    %c0_36 = arith.constant 0 : index
    %108 = vector.load %arg3[%c48, %c0_36] : memref<368x128xbf16, #tpu.memory_space<vmem>>, vector<32x64xbf16>
    %cst_37 = arith.constant dense<0.000000e+00> : vector<16x64xf32>
    %109 = tpu.matmul %107, %108, %cst_37 {dimension_numbers = #tpu.dot_dimension_numbers<[1], [0], [0], [1], [0, 0, 1, 1], [], []>} : vector<16x32xbf16>, vector<32x64xbf16>, vector<16x64xf32> -> vector<16x64xf32>
    %c3 = arith.constant 3 : index
    %c0_38 = arith.constant 0 : index
    %110 = vector.load %arg4[%c3, %c0_38] : memref<18x128xf32, #tpu.memory_space<vmem>>, vector<1x64xf32>
    %111 = vector.broadcast %110 : vector<1x64xf32> to vector<16x64xf32>
    %112 = arith.addf %109, %111 : vector<16x64xf32>
    %cst_39 = arith.constant 0.000000e+00 : f32
    %113 = vector.broadcast %cst_39 : f32 to vector<16x64xf32>
    %114 = arith.maximumf %112, %113 : vector<16x64xf32>
    %115 = arith.truncf %114 : vector<16x64xf32> to vector<16x64xbf16>
    %c80 = arith.constant 80 : index
    %c0_40 = arith.constant 0 : index
    %116 = vector.load %arg3[%c80, %c0_40] : memref<368x128xbf16, #tpu.memory_space<vmem>>, vector<64x32xbf16>
    %cst_41 = arith.constant dense<0.000000e+00> : vector<16x32xf32>
    %117 = tpu.matmul %115, %116, %cst_41 {dimension_numbers = #tpu.dot_dimension_numbers<[1], [0], [0], [1], [0, 0, 1, 1], [], []>} : vector<16x64xbf16>, vector<64x32xbf16>, vector<16x32xf32> -> vector<16x32xf32>
    %c4 = arith.constant 4 : index
    %c0_42 = arith.constant 0 : index
    %118 = vector.load %arg4[%c4, %c0_42] : memref<18x128xf32, #tpu.memory_space<vmem>>, vector<1x32xf32>
    %119 = vector.broadcast %118 : vector<1x32xf32> to vector<16x32xf32>
    %120 = arith.addf %117, %119 : vector<16x32xf32>
    %121 = arith.addf %106, %120 : vector<16x32xf32>
    %c5 = arith.constant 5 : index
    %c0_43 = arith.constant 0 : index
    %122 = vector.load %arg4[%c5, %c0_43] : memref<18x128xf32, #tpu.memory_space<vmem>>, vector<1x32xf32>
    %c6 = arith.constant 6 : index
    %c0_44 = arith.constant 0 : index
    %123 = vector.load %arg4[%c6, %c0_44] : memref<18x128xf32, #tpu.memory_space<vmem>>, vector<1x32xf32>
    %cst_45 = arith.constant dense<0.000000e+00> : vector<16xf32>
    %124 = vector.multi_reduction <add>, %121, %cst_45 [1] : vector<16x32xf32> to vector<16xf32>
    %125 = vector.shape_cast %124 : vector<16xf32> to vector<16x1xf32>
    %cst_46 = arith.constant 3.200000e+01 : f32
    %126 = vector.broadcast %cst_46 : f32 to vector<16x1xf32>
    %127 = arith.divf %125, %126 : vector<16x1xf32>
    %128 = vector.broadcast %127 : vector<16x1xf32> to vector<16x32xf32>
    %129 = arith.subf %121, %128 : vector<16x32xf32>
    %130 = arith.mulf %129, %129 : vector<16x32xf32>
    %cst_47 = arith.constant dense<0.000000e+00> : vector<16xf32>
    %131 = vector.multi_reduction <add>, %130, %cst_47 [1] : vector<16x32xf32> to vector<16xf32>
    %132 = vector.shape_cast %131 : vector<16xf32> to vector<16x1xf32>
    %cst_48 = arith.constant 3.200000e+01 : f32
    %133 = vector.broadcast %cst_48 : f32 to vector<16x1xf32>
    %134 = arith.divf %132, %133 : vector<16x1xf32>
    %135 = vector.broadcast %127 : vector<16x1xf32> to vector<16x32xf32>
    %136 = arith.subf %121, %135 : vector<16x32xf32>
    %cst_49 = arith.constant 9.99999974E-6 : f32
    %137 = vector.broadcast %cst_49 : f32 to vector<16x1xf32>
    %138 = arith.addf %134, %137 : vector<16x1xf32>
    %139 = math.rsqrt %138 : vector<16x1xf32>
    %140 = vector.broadcast %139 : vector<16x1xf32> to vector<16x32xf32>
    %141 = arith.mulf %136, %140 : vector<16x32xf32>
    %142 = vector.broadcast %122 : vector<1x32xf32> to vector<16x32xf32>
    %143 = arith.mulf %141, %142 : vector<16x32xf32>
    %144 = vector.broadcast %123 : vector<1x32xf32> to vector<16x32xf32>
    %145 = arith.addf %143, %144 : vector<16x32xf32>
    %146 = arith.truncf %145 : vector<16x32xf32> to vector<16x32xbf16>
    %c144 = arith.constant 144 : index
    %c0_50 = arith.constant 0 : index
    %147 = vector.load %arg3[%c144, %c0_50] : memref<368x128xbf16, #tpu.memory_space<vmem>>, vector<32x128xbf16>
    %cst_51 = arith.constant dense<0.000000e+00> : vector<16x128xf32>
    %148 = tpu.matmul %146, %147, %cst_51 {dimension_numbers = #tpu.dot_dimension_numbers<[1], [0], [0], [1], [0, 0, 1, 1], [], []>} : vector<16x32xbf16>, vector<32x128xbf16>, vector<16x128xf32> -> vector<16x128xf32>
    %c7 = arith.constant 7 : index
    %c0_52 = arith.constant 0 : index
    %149 = vector.load %arg4[%c7, %c0_52] : memref<18x128xf32, #tpu.memory_space<vmem>>, vector<1x128xf32>
    %150 = vector.broadcast %149 : vector<1x128xf32> to vector<16x128xf32>
    %151 = arith.addf %148, %150 : vector<16x128xf32>
    %152 = vector.extract_strided_slice %151 {offsets = [0, 0], sizes = [16, 32], strides = [1, 1]} : vector<16x128xf32> to vector<16x32xf32>
    %153 = vector.extract_strided_slice %151 {offsets = [0, 32], sizes = [16, 32], strides = [1, 1]} : vector<16x128xf32> to vector<16x32xf32>
    %154 = vector.extract_strided_slice %151 {offsets = [0, 64], sizes = [16, 32], strides = [1, 1]} : vector<16x128xf32> to vector<16x32xf32>
    %155 = vector.extract_strided_slice %152 {offsets = [0, 0], sizes = [16, 8], strides = [1, 1]} : vector<16x32xf32> to vector<16x8xf32>
    %156 = vector.extract_strided_slice %153 {offsets = [0, 0], sizes = [16, 8], strides = [1, 1]} : vector<16x32xf32> to vector<16x8xf32>
    %157 = vector.extract_strided_slice %154 {offsets = [0, 0], sizes = [16, 8], strides = [1, 1]} : vector<16x32xf32> to vector<16x8xf32>
    %cst_53 = arith.constant dense<0.000000e+00> : vector<16x16xf32>
    %158 = tpu.matmul %155, %156, %cst_53 {dimension_numbers = #tpu.dot_dimension_numbers<[1], [1], [0], [0], [0, 0, 1, 0], [], []>} : vector<16x8xf32>, vector<16x8xf32>, vector<16x16xf32> -> vector<16x16xf32>
    %cst_54 = arith.constant dense<0xFF800000> : vector<16xf32>
    %159 = vector.multi_reduction <maximumf>, %158, %cst_54 [1] : vector<16x16xf32> to vector<16xf32>
    %160 = vector.shape_cast %159 : vector<16xf32> to vector<16x1xf32>
    %161 = vector.broadcast %160 : vector<16x1xf32> to vector<16x16xf32>
    %162 = arith.subf %158, %161 : vector<16x16xf32>
    %163 = math.exp %162 : vector<16x16xf32>
    %cst_55 = arith.constant dense<0.000000e+00> : vector<16xf32>
    %164 = vector.multi_reduction <add>, %163, %cst_55 [1] : vector<16x16xf32> to vector<16xf32>
    %165 = vector.shape_cast %164 : vector<16xf32> to vector<16x1xf32>
    %166 = tpu.reciprocal %165 {approx = true} : vector<16x1xf32> -> vector<16x1xf32>
    %167 = vector.broadcast %166 : vector<16x1xf32> to vector<16x16xf32>
    %168 = arith.mulf %163, %167 : vector<16x16xf32>
    %cst_56 = arith.constant dense<0.000000e+00> : vector<16x8xf32>
    %169 = tpu.matmul %168, %157, %cst_56 {dimension_numbers = #tpu.dot_dimension_numbers<[1], [0], [0], [1], [0, 0, 1, 1], [], []>} : vector<16x16xf32>, vector<16x8xf32>, vector<16x8xf32> -> vector<16x8xf32>
    %170 = vector.extract_strided_slice %152 {offsets = [0, 8], sizes = [16, 8], strides = [1, 1]} : vector<16x32xf32> to vector<16x8xf32>
    %171 = vector.extract_strided_slice %153 {offsets = [0, 8], sizes = [16, 8], strides = [1, 1]} : vector<16x32xf32> to vector<16x8xf32>
    %172 = vector.extract_strided_slice %154 {offsets = [0, 8], sizes = [16, 8], strides = [1, 1]} : vector<16x32xf32> to vector<16x8xf32>
    %cst_57 = arith.constant dense<0.000000e+00> : vector<16x16xf32>
    %173 = tpu.matmul %170, %171, %cst_57 {dimension_numbers = #tpu.dot_dimension_numbers<[1], [1], [0], [0], [0, 0, 1, 0], [], []>} : vector<16x8xf32>, vector<16x8xf32>, vector<16x16xf32> -> vector<16x16xf32>
    %cst_58 = arith.constant dense<0xFF800000> : vector<16xf32>
    %174 = vector.multi_reduction <maximumf>, %173, %cst_58 [1] : vector<16x16xf32> to vector<16xf32>
    %175 = vector.shape_cast %174 : vector<16xf32> to vector<16x1xf32>
    %176 = vector.broadcast %175 : vector<16x1xf32> to vector<16x16xf32>
    %177 = arith.subf %173, %176 : vector<16x16xf32>
    %178 = math.exp %177 : vector<16x16xf32>
    %cst_59 = arith.constant dense<0.000000e+00> : vector<16xf32>
    %179 = vector.multi_reduction <add>, %178, %cst_59 [1] : vector<16x16xf32> to vector<16xf32>
    %180 = vector.shape_cast %179 : vector<16xf32> to vector<16x1xf32>
    %181 = tpu.reciprocal %180 {approx = true} : vector<16x1xf32> -> vector<16x1xf32>
    %182 = vector.broadcast %181 : vector<16x1xf32> to vector<16x16xf32>
    %183 = arith.mulf %178, %182 : vector<16x16xf32>
    %cst_60 = arith.constant dense<0.000000e+00> : vector<16x8xf32>
    %184 = tpu.matmul %183, %172, %cst_60 {dimension_numbers = #tpu.dot_dimension_numbers<[1], [0], [0], [1], [0, 0, 1, 1], [], []>} : vector<16x16xf32>, vector<16x8xf32>, vector<16x8xf32> -> vector<16x8xf32>
    %185 = vector.extract_strided_slice %152 {offsets = [0, 16], sizes = [16, 8], strides = [1, 1]} : vector<16x32xf32> to vector<16x8xf32>
    %186 = vector.extract_strided_slice %153 {offsets = [0, 16], sizes = [16, 8], strides = [1, 1]} : vector<16x32xf32> to vector<16x8xf32>
    %187 = vector.extract_strided_slice %154 {offsets = [0, 16], sizes = [16, 8], strides = [1, 1]} : vector<16x32xf32> to vector<16x8xf32>
    %cst_61 = arith.constant dense<0.000000e+00> : vector<16x16xf32>
    %188 = tpu.matmul %185, %186, %cst_61 {dimension_numbers = #tpu.dot_dimension_numbers<[1], [1], [0], [0], [0, 0, 1, 0], [], []>} : vector<16x8xf32>, vector<16x8xf32>, vector<16x16xf32> -> vector<16x16xf32>
    %cst_62 = arith.constant dense<0xFF800000> : vector<16xf32>
    %189 = vector.multi_reduction <maximumf>, %188, %cst_62 [1] : vector<16x16xf32> to vector<16xf32>
    %190 = vector.shape_cast %189 : vector<16xf32> to vector<16x1xf32>
    %191 = vector.broadcast %190 : vector<16x1xf32> to vector<16x16xf32>
    %192 = arith.subf %188, %191 : vector<16x16xf32>
    %193 = math.exp %192 : vector<16x16xf32>
    %cst_63 = arith.constant dense<0.000000e+00> : vector<16xf32>
    %194 = vector.multi_reduction <add>, %193, %cst_63 [1] : vector<16x16xf32> to vector<16xf32>
    %195 = vector.shape_cast %194 : vector<16xf32> to vector<16x1xf32>
    %196 = tpu.reciprocal %195 {approx = true} : vector<16x1xf32> -> vector<16x1xf32>
    %197 = vector.broadcast %196 : vector<16x1xf32> to vector<16x16xf32>
    %198 = arith.mulf %193, %197 : vector<16x16xf32>
    %cst_64 = arith.constant dense<0.000000e+00> : vector<16x8xf32>
    %199 = tpu.matmul %198, %187, %cst_64 {dimension_numbers = #tpu.dot_dimension_numbers<[1], [0], [0], [1], [0, 0, 1, 1], [], []>} : vector<16x16xf32>, vector<16x8xf32>, vector<16x8xf32> -> vector<16x8xf32>
    %200 = vector.extract_strided_slice %152 {offsets = [0, 24], sizes = [16, 8], strides = [1, 1]} : vector<16x32xf32> to vector<16x8xf32>
    %201 = vector.extract_strided_slice %153 {offsets = [0, 24], sizes = [16, 8], strides = [1, 1]} : vector<16x32xf32> to vector<16x8xf32>
    %202 = vector.extract_strided_slice %154 {offsets = [0, 24], sizes = [16, 8], strides = [1, 1]} : vector<16x32xf32> to vector<16x8xf32>
    %cst_65 = arith.constant dense<0.000000e+00> : vector<16x16xf32>
    %203 = tpu.matmul %200, %201, %cst_65 {dimension_numbers = #tpu.dot_dimension_numbers<[1], [1], [0], [0], [0, 0, 1, 0], [], []>} : vector<16x8xf32>, vector<16x8xf32>, vector<16x16xf32> -> vector<16x16xf32>
    %cst_66 = arith.constant dense<0xFF800000> : vector<16xf32>
    %204 = vector.multi_reduction <maximumf>, %203, %cst_66 [1] : vector<16x16xf32> to vector<16xf32>
    %205 = vector.shape_cast %204 : vector<16xf32> to vector<16x1xf32>
    %206 = vector.broadcast %205 : vector<16x1xf32> to vector<16x16xf32>
    %207 = arith.subf %203, %206 : vector<16x16xf32>
    %208 = math.exp %207 : vector<16x16xf32>
    %cst_67 = arith.constant dense<0.000000e+00> : vector<16xf32>
    %209 = vector.multi_reduction <add>, %208, %cst_67 [1] : vector<16x16xf32> to vector<16xf32>
    %210 = vector.shape_cast %209 : vector<16xf32> to vector<16x1xf32>
    %211 = tpu.reciprocal %210 {approx = true} : vector<16x1xf32> -> vector<16x1xf32>
    %212 = vector.broadcast %211 : vector<16x1xf32> to vector<16x16xf32>
    %213 = arith.mulf %208, %212 : vector<16x16xf32>
    %cst_68 = arith.constant dense<0.000000e+00> : vector<16x8xf32>
    %214 = tpu.matmul %213, %202, %cst_68 {dimension_numbers = #tpu.dot_dimension_numbers<[1], [0], [0], [1], [0, 0, 1, 1], [], []>} : vector<16x16xf32>, vector<16x8xf32>, vector<16x8xf32> -> vector<16x8xf32>
    %215 = tpu.concatenate %169, %184, %199, %214 in 1 : vector<16x8xf32>, vector<16x8xf32>, vector<16x8xf32>, vector<16x8xf32> -> vector<16x32xf32>
    %216 = arith.truncf %215 : vector<16x32xf32> to vector<16x32xbf16>
    %c144_69 = arith.constant 144 : index
    %c96_70 = arith.constant 96 : index
    %217 = vector.load %arg3[%c144_69, %c96_70] : memref<368x128xbf16, #tpu.memory_space<vmem>>, vector<32x32xbf16>
    %cst_71 = arith.constant dense<0.000000e+00> : vector<16x32xf32>
    %218 = tpu.matmul %216, %217, %cst_71 {dimension_numbers = #tpu.dot_dimension_numbers<[1], [0], [0], [1], [0, 0, 1, 1], [], []>} : vector<16x32xbf16>, vector<32x32xbf16>, vector<16x32xf32> -> vector<16x32xf32>
    %c7_72 = arith.constant 7 : index
    %c96_73 = arith.constant 96 : index
    %219 = vector.load %arg4[%c7_72, %c96_73] : memref<18x128xf32, #tpu.memory_space<vmem>>, vector<1x32xf32>
    %220 = vector.broadcast %219 : vector<1x32xf32> to vector<16x32xf32>
    %221 = arith.addf %218, %220 : vector<16x32xf32>
    %222 = arith.addf %145, %221 : vector<16x32xf32>
    %c8 = arith.constant 8 : index
    %c0_74 = arith.constant 0 : index
    %223 = vector.load %arg4[%c8, %c0_74] : memref<18x128xf32, #tpu.memory_space<vmem>>, vector<1x32xf32>
    %c9 = arith.constant 9 : index
    %c0_75 = arith.constant 0 : index
    %224 = vector.load %arg4[%c9, %c0_75] : memref<18x128xf32, #tpu.memory_space<vmem>>, vector<1x32xf32>
    %cst_76 = arith.constant dense<0.000000e+00> : vector<16xf32>
    %225 = vector.multi_reduction <add>, %222, %cst_76 [1] : vector<16x32xf32> to vector<16xf32>
    %226 = vector.shape_cast %225 : vector<16xf32> to vector<16x1xf32>
    %cst_77 = arith.constant 3.200000e+01 : f32
    %227 = vector.broadcast %cst_77 : f32 to vector<16x1xf32>
    %228 = arith.divf %226, %227 : vector<16x1xf32>
    %229 = vector.broadcast %228 : vector<16x1xf32> to vector<16x32xf32>
    %230 = arith.subf %222, %229 : vector<16x32xf32>
    %231 = arith.mulf %230, %230 : vector<16x32xf32>
    %cst_78 = arith.constant dense<0.000000e+00> : vector<16xf32>
    %232 = vector.multi_reduction <add>, %231, %cst_78 [1] : vector<16x32xf32> to vector<16xf32>
    %233 = vector.shape_cast %232 : vector<16xf32> to vector<16x1xf32>
    %cst_79 = arith.constant 3.200000e+01 : f32
    %234 = vector.broadcast %cst_79 : f32 to vector<16x1xf32>
    %235 = arith.divf %233, %234 : vector<16x1xf32>
    %236 = vector.broadcast %228 : vector<16x1xf32> to vector<16x32xf32>
    %237 = arith.subf %222, %236 : vector<16x32xf32>
    %cst_80 = arith.constant 9.99999974E-6 : f32
    %238 = vector.broadcast %cst_80 : f32 to vector<16x1xf32>
    %239 = arith.addf %235, %238 : vector<16x1xf32>
    %240 = math.rsqrt %239 : vector<16x1xf32>
    %241 = vector.broadcast %240 : vector<16x1xf32> to vector<16x32xf32>
    %242 = arith.mulf %237, %241 : vector<16x32xf32>
    %243 = vector.broadcast %223 : vector<1x32xf32> to vector<16x32xf32>
    %244 = arith.mulf %242, %243 : vector<16x32xf32>
    %245 = vector.broadcast %224 : vector<1x32xf32> to vector<16x32xf32>
    %246 = arith.addf %244, %245 : vector<16x32xf32>
    %247 = arith.truncf %246 : vector<16x32xf32> to vector<16x32xbf16>
    %c176 = arith.constant 176 : index
    %c0_81 = arith.constant 0 : index
    %248 = vector.load %arg3[%c176, %c0_81] : memref<368x128xbf16, #tpu.memory_space<vmem>>, vector<32x64xbf16>
    %cst_82 = arith.constant dense<0.000000e+00> : vector<16x64xf32>
    %249 = tpu.matmul %247, %248, %cst_82 {dimension_numbers = #tpu.dot_dimension_numbers<[1], [0], [0], [1], [0, 0, 1, 1], [], []>} : vector<16x32xbf16>, vector<32x64xbf16>, vector<16x64xf32> -> vector<16x64xf32>
    %c10 = arith.constant 10 : index
    %c0_83 = arith.constant 0 : index
    %250 = vector.load %arg4[%c10, %c0_83] : memref<18x128xf32, #tpu.memory_space<vmem>>, vector<1x64xf32>
    %251 = vector.broadcast %250 : vector<1x64xf32> to vector<16x64xf32>
    %252 = arith.addf %249, %251 : vector<16x64xf32>
    %cst_84 = arith.constant 0.000000e+00 : f32
    %253 = vector.broadcast %cst_84 : f32 to vector<16x64xf32>
    %254 = arith.maximumf %252, %253 : vector<16x64xf32>
    %255 = arith.truncf %254 : vector<16x64xf32> to vector<16x64xbf16>
    %c208 = arith.constant 208 : index
    %c0_85 = arith.constant 0 : index
    %256 = vector.load %arg3[%c208, %c0_85] : memref<368x128xbf16, #tpu.memory_space<vmem>>, vector<64x32xbf16>
    %cst_86 = arith.constant dense<0.000000e+00> : vector<16x32xf32>
    %257 = tpu.matmul %255, %256, %cst_86 {dimension_numbers = #tpu.dot_dimension_numbers<[1], [0], [0], [1], [0, 0, 1, 1], [], []>} : vector<16x64xbf16>, vector<64x32xbf16>, vector<16x32xf32> -> vector<16x32xf32>
    %c11 = arith.constant 11 : index
    %c0_87 = arith.constant 0 : index
    %258 = vector.load %arg4[%c11, %c0_87] : memref<18x128xf32, #tpu.memory_space<vmem>>, vector<1x32xf32>
    %259 = vector.broadcast %258 : vector<1x32xf32> to vector<16x32xf32>
    %260 = arith.addf %257, %259 : vector<16x32xf32>
    %261 = arith.addf %246, %260 : vector<16x32xf32>
    %c12 = arith.constant 12 : index
    %c0_88 = arith.constant 0 : index
    %262 = vector.load %arg4[%c12, %c0_88] : memref<18x128xf32, #tpu.memory_space<vmem>>, vector<1x32xf32>
    %c13 = arith.constant 13 : index
    %c0_89 = arith.constant 0 : index
    %263 = vector.load %arg4[%c13, %c0_89] : memref<18x128xf32, #tpu.memory_space<vmem>>, vector<1x32xf32>
    %cst_90 = arith.constant dense<0.000000e+00> : vector<16xf32>
    %264 = vector.multi_reduction <add>, %261, %cst_90 [1] : vector<16x32xf32> to vector<16xf32>
    %265 = vector.shape_cast %264 : vector<16xf32> to vector<16x1xf32>
    %cst_91 = arith.constant 3.200000e+01 : f32
    %266 = vector.broadcast %cst_91 : f32 to vector<16x1xf32>
    %267 = arith.divf %265, %266 : vector<16x1xf32>
    %268 = vector.broadcast %267 : vector<16x1xf32> to vector<16x32xf32>
    %269 = arith.subf %261, %268 : vector<16x32xf32>
    %270 = arith.mulf %269, %269 : vector<16x32xf32>
    %cst_92 = arith.constant dense<0.000000e+00> : vector<16xf32>
    %271 = vector.multi_reduction <add>, %270, %cst_92 [1] : vector<16x32xf32> to vector<16xf32>
    %272 = vector.shape_cast %271 : vector<16xf32> to vector<16x1xf32>
    %cst_93 = arith.constant 3.200000e+01 : f32
    %273 = vector.broadcast %cst_93 : f32 to vector<16x1xf32>
    %274 = arith.divf %272, %273 : vector<16x1xf32>
    %275 = vector.broadcast %267 : vector<16x1xf32> to vector<16x32xf32>
    %276 = arith.subf %261, %275 : vector<16x32xf32>
    %cst_94 = arith.constant 9.99999974E-6 : f32
    %277 = vector.broadcast %cst_94 : f32 to vector<16x1xf32>
    %278 = arith.addf %274, %277 : vector<16x1xf32>
    %279 = math.rsqrt %278 : vector<16x1xf32>
    %280 = vector.broadcast %279 : vector<16x1xf32> to vector<16x32xf32>
    %281 = arith.mulf %276, %280 : vector<16x32xf32>
    %282 = vector.broadcast %262 : vector<1x32xf32> to vector<16x32xf32>
    %283 = arith.mulf %281, %282 : vector<16x32xf32>
    %284 = vector.broadcast %263 : vector<1x32xf32> to vector<16x32xf32>
    %285 = arith.addf %283, %284 : vector<16x32xf32>
    %c14 = arith.constant 14 : index
    %c0_95 = arith.constant 0 : index
    %286 = vector.load %arg4[%c14, %c0_95] : memref<18x128xf32, #tpu.memory_space<vmem>>, vector<1x32xf32>
    %c15 = arith.constant 15 : index
    %c0_96 = arith.constant 0 : index
    %287 = vector.load %arg4[%c15, %c0_96] : memref<18x128xf32, #tpu.memory_space<vmem>>, vector<1x32xf32>
    %cst_97 = arith.constant dense<0.000000e+00> : vector<16xf32>
    %288 = vector.multi_reduction <add>, %285, %cst_97 [1] : vector<16x32xf32> to vector<16xf32>
    %289 = vector.shape_cast %288 : vector<16xf32> to vector<16x1xf32>
    %cst_98 = arith.constant 3.200000e+01 : f32
    %290 = vector.broadcast %cst_98 : f32 to vector<16x1xf32>
    %291 = arith.divf %289, %290 : vector<16x1xf32>
    %292 = vector.broadcast %291 : vector<16x1xf32> to vector<16x32xf32>
    %293 = arith.subf %285, %292 : vector<16x32xf32>
    %294 = arith.mulf %293, %293 : vector<16x32xf32>
    %cst_99 = arith.constant dense<0.000000e+00> : vector<16xf32>
    %295 = vector.multi_reduction <add>, %294, %cst_99 [1] : vector<16x32xf32> to vector<16xf32>
    %296 = vector.shape_cast %295 : vector<16xf32> to vector<16x1xf32>
    %cst_100 = arith.constant 3.200000e+01 : f32
    %297 = vector.broadcast %cst_100 : f32 to vector<16x1xf32>
    %298 = arith.divf %296, %297 : vector<16x1xf32>
    %299 = vector.broadcast %291 : vector<16x1xf32> to vector<16x32xf32>
    %300 = arith.subf %285, %299 : vector<16x32xf32>
    %cst_101 = arith.constant 9.99999974E-6 : f32
    %301 = vector.broadcast %cst_101 : f32 to vector<16x1xf32>
    %302 = arith.addf %298, %301 : vector<16x1xf32>
    %303 = math.rsqrt %302 : vector<16x1xf32>
    %304 = vector.broadcast %303 : vector<16x1xf32> to vector<16x32xf32>
    %305 = arith.mulf %300, %304 : vector<16x32xf32>
    %306 = vector.broadcast %286 : vector<1x32xf32> to vector<16x32xf32>
    %307 = arith.mulf %305, %306 : vector<16x32xf32>
    %308 = vector.broadcast %287 : vector<1x32xf32> to vector<16x32xf32>
    %309 = arith.addf %307, %308 : vector<16x32xf32>
    %310 = arith.truncf %309 : vector<16x32xf32> to vector<16x32xbf16>
    %c272 = arith.constant 272 : index
    %c0_102 = arith.constant 0 : index
    %311 = vector.load %arg3[%c272, %c0_102] : memref<368x128xbf16, #tpu.memory_space<vmem>>, vector<32x64xbf16>
    %cst_103 = arith.constant dense<0.000000e+00> : vector<16x64xf32>
    %312 = tpu.matmul %310, %311, %cst_103 {dimension_numbers = #tpu.dot_dimension_numbers<[1], [0], [0], [1], [0, 0, 1, 1], [], []>} : vector<16x32xbf16>, vector<32x64xbf16>, vector<16x64xf32> -> vector<16x64xf32>
    %c16_104 = arith.constant 16 : index
    %c0_105 = arith.constant 0 : index
    %313 = vector.load %arg4[%c16_104, %c0_105] : memref<18x128xf32, #tpu.memory_space<vmem>>, vector<1x64xf32>
    %314 = vector.broadcast %313 : vector<1x64xf32> to vector<16x64xf32>
    %315 = arith.addf %312, %314 : vector<16x64xf32>
    %cst_106 = arith.constant 0.000000e+00 : f32
    %316 = vector.broadcast %cst_106 : f32 to vector<16x64xf32>
    %317 = arith.maximumf %315, %316 : vector<16x64xf32>
    %318 = arith.truncf %317 : vector<16x64xf32> to vector<16x64xbf16>
    %c304 = arith.constant 304 : index
    %c0_107 = arith.constant 0 : index
    %319 = vector.load %arg3[%c304, %c0_107] : memref<368x128xbf16, #tpu.memory_space<vmem>>, vector<64x128xbf16>
    %cst_108 = arith.constant dense<0.000000e+00> : vector<16x128xf32>
    %320 = tpu.matmul %318, %319, %cst_108 {dimension_numbers = #tpu.dot_dimension_numbers<[1], [0], [0], [1], [0, 0, 1, 1], [], []>} : vector<16x64xbf16>, vector<64x128xbf16>, vector<16x128xf32> -> vector<16x128xf32>
    %c17 = arith.constant 17 : index
    %c0_109 = arith.constant 0 : index
    %321 = vector.load %arg4[%c17, %c0_109] : memref<18x128xf32, #tpu.memory_space<vmem>>, vector<1x128xf32>
    %322 = vector.broadcast %321 : vector<1x128xf32> to vector<16x128xf32>
    %323 = arith.addf %320, %322 : vector<16x128xf32>
    %c0_110 = arith.constant 0 : index
    %c0_111 = arith.constant 0 : index
    %324 = vector.load %arg5[%c0_110, %c0_111] : memref<16x128xf32, #tpu.memory_space<vmem>>, vector<16x128xf32>
    tpu.vector_store %arg5[%c0_110, %c0_111], %323 {strides = array<i32>} : memref<16x128xf32, #tpu.memory_space<vmem>>, vector<16x128xf32>,
    return
  }
  func.func @transform_0(%arg0: i32) -> (i32, i32) {
    %c0_i32 = arith.constant 0 : i32
    %c0_i32_0 = arith.constant 0 : i32
    return %arg0, %c0_i32 : i32, i32
  }
  func.func @transform_1(%arg0: i32) -> (i32, i32) {
    %c0_i32 = arith.constant 0 : i32
    %c0_i32_0 = arith.constant 0 : i32
    return %arg0, %c0_i32 : i32, i32
  }
  func.func @transform_2(%arg0: i32) -> (i32, i32) {
    %c0_i32 = arith.constant 0 : i32
    %c0_i32_0 = arith.constant 0 : i32
    %c0_i32_1 = arith.constant 0 : i32
    return %c0_i32, %c0_i32_0 : i32, i32
  }
  func.func @transform_3(%arg0: i32) -> (i32, i32) {
    %c0_i32 = arith.constant 0 : i32
    %c0_i32_0 = arith.constant 0 : i32
    %c0_i32_1 = arith.constant 0 : i32
    return %c0_i32, %c0_i32_0 : i32, i32
  }
  func.func @transform_4(%arg0: i32) -> (i32, i32) {
    %c0_i32 = arith.constant 0 : i32
    %c0_i32_0 = arith.constant 0 : i32
    return %arg0, %c0_i32 : i32, i32
  }
}

</mosaic_0001>

<llo_original>
// kernel: tpu_custom_call.1
$region0: #{tpu_custom_call.1}
  #allocation0 [shape = 'u32[]', space=smem, size = 0x4, offset = 0x4, fixed_abs, tag = 'smem constant byte address 0x4 - core index']
  #allocation1 [shape = 'u32[72,128]{1,0:T(1,128)}', space=vmem, size = 0x9000, scoped, tag = 'internal scratch']
  %s0 = inlined_call_operand.vmem [shape: f32[32,8], index: 0, kind: input, shape index: {}]
  %s1 = inlined_call_operand.vmem [shape: f32[32,32], index: 1, kind: input, shape index: {}]
  %s2 = inlined_call_operand.hbm [shape: bf16[368,128], index: 2, kind: input, shape index: {}]
  %s3 = inlined_call_operand.hbm [shape: f32[18,128], index: 3, kind: input, shape index: {}]
  %s4 = inlined_call_operand.hbm [shape: f32[32,128], index: 4, kind: output, shape index: {}]
  %s5 = sld [smem:[#allocation0]]
  $region57: #{tpu_custom_call.1} parent=0
    _
  %s7 = ssub.s32 1, %s5
  %s8 = scalar_select 0, %s7, %s5
  $region1: #{tpu_custom_call.1} parent=0
    #allocation2 [shape = 'u8[94208]{0}', space=vmem, size = 0x17000, scoped, tag = 'input window, operand 2, single buffered']
    #allocation3 [shape = 's32[2]{0}', space=sflag, size = 0x8, scoped, tag = 'scoped memory for tpu_custom_call.1']
    #allocation4 [shape = 's32[2]{0}', space=sflag, size = 0x8, scoped, tag = 'scoped memory for tpu_custom_call.1']
    #allocation5 [shape = 'u8[12288]{0}', space=vmem, size = 0x3000, scoped, tag = 'input window, operand 3, single buffered']
    #allocation6 [shape = 's32[1]{0}', space=sflag, size = 0x4, scoped, tag = 'scoped memory for tpu_custom_call.1']
    #allocation7 [shape = 'u8[16384]{0}', space=vmem, size = 0x4000, scoped, tag = 'output window, operand 0']
    %9 = vsyncpa [#allocation3], 0
    %10 = vsyncpa [#allocation6], 0
    %11 = vsyncpa [#allocation4], 0
    %s12 = scalar_lea.sflag [#allocation4], 1
    %13 = vsyncpa %s12, 0
    loop: start=0, step=1, limit=4
    $region2: #{tpu_custom_call.1} parent=1 // loop_pre_header
      _
    $region3: #{tpu_custom_call.1} parent=1 // loop_header
      %s15 = sphi 0, %s19
      %p16 = scmp.ge.s32.totalorder %s15, 4
      %s25 = sphi 0, %s27
      %s28 = sphi 0, %s25
      %s29 = sphi 0, %s28
      %s45 = sphi 0, %s29
      %s51 = sphi 0, %s53
      %s54 = sphi 0, %s51
      %s55 = sphi 0, %s54
      %s71 = sphi 0, %s55
      %s75 = sphi 0, %s75
      %s77 = sphi 0, %s75
      %s78 = sphi 0, %s77
      %s92 = sphi 0, %s78
      %s96 = sphi 0, %s96
      %s98 = sphi 0, %s96
      %s99 = sphi 0, %s98
      %s113 = sphi 0, %s99
      %s119 = sphi 0, %s121
      %s122 = sphi 0, %s119
      %s123 = sphi 0, %s122
      %s139 = sphi 0, %s123
    $region4: #{tpu_custom_call.1} parent=1 // loop_header_branch
      %18 = sbr.rel (%p16) target = $region8
    $region5: #{tpu_custom_call.1} parent=1 // loop_body
      %s20 = ssub.s32 %s15, 1
      %s21 = ssub.s32 %s15, 2
      %s22 = sadd.s32 %s15, 1
      %s23 = ssub.s32 %s15, %s22
      %p24 = scmp.eq.s32.totalorder %s23, 0
      %s26 = sadd.s32 %s25, 1
      %s27 = scalar_select %p24, %s25, %s26
      %p30 = pneg %p24
      %p31 = scmp.eq.s32.totalorder %s15, 1
      %p32 = por %p30, %p31
      %p33 = scmp.ne.s32.totalorder %s25, %s28
      %p34 = scmp.eq.s32.totalorder %s15, 0
      %p35 = por %p33, %p34
      %p36 = scmp.ne.s32.totalorder %s25, %s28
      %p37 = scmp.eq.s32.totalorder %s20, 1
      %p38 = por %p36, %p37
      %p39 = scmp.ne.s32.totalorder %s28, %s29
      %p40 = scmp.eq.s32.totalorder %s20, 0
      %p41 = por %p39, %p40
      %p42 = scmp.ne.s32.totalorder %s28, %s29
      %p43 = scmp.eq.s32.totalorder %s21, 1
      %p44 = por %p42, %p43
      %p46 = scmp.ne.s32.totalorder %s29, %s45
      %p47 = scmp.eq.s32.totalorder %s21, 0
      %p48 = por %p46, %p47
      %s49 = ssub.s32 %s15, %s22
      %p50 = scmp.eq.s32.totalorder %s49, 0
      %s52 = sadd.s32 %s51, 1
      %s53 = scalar_select %p50, %s51, %s52
      %p56 = pneg %p50
      %p57 = scmp.eq.s32.totalorder %s15, 1
      %p58 = por %p56, %p57
      %p59 = scmp.ne.s32.totalorder %s51, %s54
      %p60 = scmp.eq.s32.totalorder %s15, 0
      %p61 = por %p59, %p60
      %p62 = scmp.ne.s32.totalorder %s51, %s54
      %p63 = scmp.eq.s32.totalorder %s20, 1
      %p64 = por %p62, %p63
      %p65 = scmp.ne.s32.totalorder %s54, %s55
      %p66 = scmp.eq.s32.totalorder %s20, 0
      %p67 = por %p65, %p66
      %p68 = scmp.ne.s32.totalorder %s54, %s55
      %p69 = scmp.eq.s32.totalorder %s21, 1
      %p70 = por %p68, %p69
      %p72 = scmp.ne.s32.totalorder %s55, %s71
      %p73 = scmp.eq.s32.totalorder %s21, 0
      %p74 = por %p72, %p73
      %s76 = sadd.s32 %s75, 1
      %p79 = scmp.eq.s32.totalorder %s15, 1
      %p80 = scmp.ne.s32.totalorder %s75, %s77
      %p81 = scmp.eq.s32.totalorder %s15, 0
      %p82 = por %p80, %p81
      %p83 = scmp.ne.s32.totalorder %s75, %s77
      %p84 = scmp.eq.s32.totalorder %s20, 1
      %p85 = por %p83, %p84
      %p86 = scmp.ne.s32.totalorder %s77, %s78
      %p87 = scmp.eq.s32.totalorder %s20, 0
      %p88 = por %p86, %p87
      %p89 = scmp.ne.s32.totalorder %s77, %s78
      %p90 = scmp.eq.s32.totalorder %s21, 1
      %p91 = por %p89, %p90
      %p93 = scmp.ne.s32.totalorder %s78, %s92
      %p94 = scmp.eq.s32.totalorder %s21, 0
      %p95 = por %p93, %p94
      %s97 = sadd.s32 %s96, 1
      %p100 = scmp.eq.s32.totalorder %s15, 1
      %p101 = scmp.ne.s32.totalorder %s96, %s98
      %p102 = scmp.eq.s32.totalorder %s15, 0
      %p103 = por %p101, %p102
      %p104 = scmp.ne.s32.totalorder %s96, %s98
      %p105 = scmp.eq.s32.totalorder %s20, 1
      %p106 = por %p104, %p105
      %p107 = scmp.ne.s32.totalorder %s98, %s99
      %p108 = scmp.eq.s32.totalorder %s20, 0
      %p109 = por %p107, %p108
      %p110 = scmp.ne.s32.totalorder %s98, %s99
      %p111 = scmp.eq.s32.totalorder %s21, 1
      %p112 = por %p110, %p111
      %p114 = scmp.ne.s32.totalorder %s99, %s113
      %p115 = scmp.eq.s32.totalorder %s21, 0
      %p116 = por %p114, %p115
      %s117 = ssub.s32 %s15, %s22
      %p118 = scmp.eq.s32.totalorder %s117, 0
      %s120 = sadd.s32 %s119, 1
      %s121 = scalar_select %p118, %s119, %s120
      %p124 = pneg %p118
      %p125 = scmp.eq.s32.totalorder %s15, 1
      %p126 = por %p124, %p125
      %p127 = scmp.ne.s32.totalorder %s119, %s122
      %p128 = scmp.eq.s32.totalorder %s15, 0
      %p129 = por %p127, %p128
      %p130 = scmp.ne.s32.totalorder %s119, %s122
      %p131 = scmp.eq.s32.totalorder %s20, 1
      %p132 = por %p130, %p131
      %p133 = scmp.ne.s32.totalorder %s122, %s123
      %p134 = scmp.eq.s32.totalorder %s20, 0
      %p135 = por %p133, %p134
      %p136 = scmp.ne.s32.totalorder %s122, %s123
      %p137 = scmp.eq.s32.totalorder %s21, 1
      %p138 = por %p136, %p137
      %p140 = scmp.ne.s32.totalorder %s123, %s139
      %p141 = scmp.eq.s32.totalorder %s21, 0
      %p142 = por %p140, %p141
      %p143 = scmp.le.s32.totalorder 1, %s15
      %p144 = scmp.lt.s32.totalorder %s15, 3
      %p145 = pnand %p143, %p144
      %p146 = pneg %p145
      // Predicated region
      $region9: #{tpu_custom_call.1} parent=5 // pred_check
        _
      $region10: #{tpu_custom_call.1} parent=5 // pred_check_branch
        %148 = sbr.rel (%p145) target = $region12
      $region11: #{tpu_custom_call.1} parent=5 // pred_region
        %s149 = ssub.s32 %s15, 1
        // Predicated region
        $region13: #{tpu_custom_call.1} parent=11 // pred_check
          %p150 = pneg %p88
        $region14: #{tpu_custom_call.1} parent=11 // pred_check_branch
          %152 = sbr.rel (%p150) target = $region16
        $region15: #{tpu_custom_call.1} parent=11 // pred_region
          %154 = vsyncadd [#allocation3], 0
          %s155 = sshll.u32 %s2, 4
          %s156 = int_to_ptr.hbm [resolvable:$true] %s155
          %s157 = sshll.u32 [#allocation2], 4
          %s158 = int_to_ptr.vmem [resolvable:$true] %s157
          %163 = dma.hbm_to_vmem [thread:$0]  %s156, 2944, %s158, [#allocation3], 64, 64, 4
        $region16: #{tpu_custom_call.1} parent=11 // pred_fallthru
          _
        // Predicated region
        $region17: #{tpu_custom_call.1} parent=11 // pred_check
          %p164 = pneg %p109
        $region18: #{tpu_custom_call.1} parent=11 // pred_check_branch
          %166 = sbr.rel (%p164) target = $region20
        $region19: #{tpu_custom_call.1} parent=11 // pred_region
          %168 = vsyncadd [#allocation6], 0
          %s169 = sshll.u32 %s3, 4
          %s170 = int_to_ptr.hbm [resolvable:$true] %s169
          %s171 = sshll.u32 [#allocation5], 4
          %s172 = int_to_ptr.vmem [resolvable:$true] %s171
          %177 = dma.hbm_to_vmem [thread:$0]  %s170, 384, %s172, [#allocation6], 128, 128, 8
        $region20: #{tpu_custom_call.1} parent=11 // pred_fallthru
          _
      $region12: #{tpu_custom_call.1} parent=5 // pred_fallthru
        _
      %p178 = scmp.lt.s32.totalorder %s15, 2
      // Predicated region
      $region21: #{tpu_custom_call.1} parent=5 // pred_check
        %p179 = pneg %p178
      $region22: #{tpu_custom_call.1} parent=5 // pred_check_branch
        %181 = sbr.rel (%p179) target = $region24
      $region23: #{tpu_custom_call.1} parent=5 // pred_region
        // Predicated region
        $region25: #{tpu_custom_call.1} parent=23 // pred_check
          %p182 = pneg %p35
        $region26: #{tpu_custom_call.1} parent=23 // pred_check_branch
          %184 = sbr.rel (%p182) target = $region28
        $region27: #{tpu_custom_call.1} parent=23 // pred_region
          %s185 = smul.u32 2, %s15
          %p186 = scmp.lt.s32.totalorder %s185, 3
          %s187 = scalar_select %p186, %s185, 3
          %s188 = smul.addr %s187, 8
          %s189 = scalar_lea.vmem %s0, %s188
          %s190 = smul.u32 2, %s15
        $region28: #{tpu_custom_call.1} parent=23 // pred_fallthru
          _
        // Predicated region
        $region29: #{tpu_custom_call.1} parent=23 // pred_check
          %p191 = pneg %p61
        $region30: #{tpu_custom_call.1} parent=23 // pred_check_branch
          %193 = sbr.rel (%p191) target = $region32
        $region31: #{tpu_custom_call.1} parent=23 // pred_region
          %s194 = smul.u32 2, %s15
          %p195 = scmp.lt.s32.totalorder %s194, 3
          %s196 = scalar_select %p195, %s194, 3
          %s197 = smul.addr %s196, 8
          %s198 = scalar_lea.vmem %s1, %s197
          %s199 = smul.u32 2, %s15
        $region32: #{tpu_custom_call.1} parent=23 // pred_fallthru
          _
      $region24: #{tpu_custom_call.1} parent=5 // pred_fallthru
        _
      %p200 = scmp.le.s32.totalorder 1, %s15
      %p201 = scmp.lt.s32.totalorder %s15, 3
      %p202 = pnand %p200, %p201
      %p203 = pneg %p202
      // Predicated region
      $region33: #{tpu_custom_call.1} parent=5 // pred_check
        _
      $region34: #{tpu_custom_call.1} parent=5 // pred_check_branch
        %205 = sbr.rel (%p202) target = $region36
      $region35: #{tpu_custom_call.1} parent=5 // pred_region
        %s206 = ssub.s32 %s15, 1
        // Predicated region
        $region37: #{tpu_custom_call.1} parent=35 // pred_check
          %p207 = pneg %p88
        $region38: #{tpu_custom_call.1} parent=35 // pred_check_branch
          %209 = sbr.rel (%p207) target = $region40
        $region39: #{tpu_custom_call.1} parent=35 // pred_region
          %211 = dma.done [#allocation3], 2944
        $region40: #{tpu_custom_call.1} parent=35 // pred_fallthru
          _
        // Predicated region
        $region41: #{tpu_custom_call.1} parent=35 // pred_check
          %p212 = pneg %p109
        $region42: #{tpu_custom_call.1} parent=35 // pred_check_branch
          %214 = sbr.rel (%p212) target = $region44
        $region43: #{tpu_custom_call.1} parent=35 // pred_region
          %216 = dma.done [#allocation6], 384
        $region44: #{tpu_custom_call.1} parent=35 // pred_fallthru
          _
        %s217 = smul.u32 2, %s20
        %p218 = scmp.lt.s32.totalorder %s217, 3
        %s219 = scalar_select %p218, %s217, 3
        %s220 = smul.addr %s219, 8
        %s221 = scalar_lea.vmem %s0, %s220
        %p222 = pneg %p41
        %p223 = pneg %p38
        %s224 = smul.u32 2, %s20
        %p225 = scmp.lt.s32.totalorder %s224, 3
        %s226 = scalar_select %p225, %s224, 3
        %s227 = smul.addr %s226, 8
        %s228 = scalar_lea.vmem %s1, %s227
        %p229 = pneg %p67
        %p230 = pneg %p64
        %p231 = pneg %p88
        %p232 = pneg %p85
        %p233 = pneg %p109
        %p234 = pneg %p106
        %p235 = pneg %p135
        %p236 = pneg %p132
        %s237 = sand.u32 %s122, 1
        %s238 = scalar_lea.sflag [#allocation4], %s237
        %s239 = sand.u32 %s122, 1
        %s240 = smul.addr %s239, 16
        %s241 = scalar_lea.vmem [#allocation7], %s240
        %s242 = smul.u32 2, %s20
        %p243 = scmp.lt.s32.totalorder %s242, 3
        %s244 = scalar_select %p243, %s242, 3
        %s245 = smul.addr %s244, 8
        %s246 = scalar_lea.vmem %s0, %s245
        %s247 = smul.u32 2, %s20
        %s248 = smul.u32 2, %s20
        %p249 = scmp.lt.s32.totalorder %s248, 3
        %s250 = scalar_select %p249, %s248, 3
        %s251 = smul.addr %s250, 8
        %s252 = scalar_lea.vmem %s1, %s251
        %s253 = smul.u32 2, %s20
        %s254 = smul.u32 2, %s20
        %v256 = vld [vmem:[%s246] sm:$0xff]
        %v257 = vld [vmem:[%s246 + $0x8] sm:$0xff]
        %v258 = vpack.c.bf16 %v257, %v256
        %v259 = vld [vmem:[#allocation2] sm:$0xf]
        %v260 = vld [vmem:[%s252] sm:$0xff]
        %v261 = vld [vmem:[%s252 + $0x8] sm:$0xff]
        %vm262 = vcmask 64512
        %v264 = vsel %vm262, %v258, 0
        %vm266 = vcmask 1043456
        %v268 = vsel %vm266, %v259, 0
        %270 = vmatpush.bf16.msra.mxu0 0
        %271 = vmatpush.bf16.msra.mxu0 0
        %272 = vmatpush.bf16.msra.mxu0 0
        %273 = vmatpush.bf16.msra.mxu0 0
        %274 = vmatpush.bf16.msra.mxu0 0
        %275 = vmatpush.bf16.msra.mxu0 0
        %276 = vmatpush.bf16.msra.mxu0 0
        %277 = vmatpush.bf16.msra.mxu0 %v268
        %278 = vmatmul.bf16.gmra.mxu0 %v264
        %v279 = vpop.f32.mrf.mxu0
        %v280 = vadd.f32 %v260, %v279
        %v281 = vpop.f32.mrf.mxu0
        %v282 = vadd.f32 %v261, %v281
        %283 = vdwg.mxu0
        %v284 = vpack.c.bf16 %v282, %v280
        %v285 = vld [vmem:[#allocation2 + $0x8] sm:$0xf]
        %v286 = vld [vmem:[#allocation2 + $0xc] sm:$0xf]
        %v287 = vld [vmem:[#allocation2 + $0x10] sm:$0xf]
        %v288 = vld [vmem:[#allocation2 + $0x14] sm:$0xf]
        %v289 = vld [vmem:[#allocation5] sm:$0x1]
        %v290 = vperm.slane %v289, 0
        %v295 = vunpack.c.l.b16 %v285
        %v296 = vunpack.c.l.b16 %v286
        %v297 = vunpack.c.l.b16 %v287
        %v298 = vunpack.c.l.b16 %v288
        %v299 = vpack.c.b16 %v296, %v295
        %v300 = vpack.c.b16 %v298, %v297
        %vm303 = vcmask 261120
        %v305 = vsel %vm303, %v284, 0
        %307 = vmatpush.bf16.msra.mxu0 0
        %308 = vmatpush.bf16.msra.mxu0 0
        %309 = vmatpush.bf16.msra.mxu0 0
        %310 = vmatpush.bf16.msra.mxu0 0
        %311 = vmatpush.bf16.msra.mxu0 0
        %312 = vmatpush.bf16.msra.mxu0 0
        %313 = vmatpush.bf16.msra.mxu0 %v300
        %314 = vmatpush.bf16.msra.mxu0 %v299
        %315 = vmatmul.bf16.gmra.mxu0 %v305
        %v316 = vpop.f32.mrf.mxu0
        %v317 = vadd.f32 %v290, %v316
        %v318 = vpop.f32.mrf.mxu0
        %v319 = vadd.f32 %v290, %v318
        %320 = vdwg.mxu0
        %323 = vrot.lane.b32.xlu0 %v317, 96
        %v324 = vpop.permute.xlu0 %323
        %325 = vrot.lane.b32.xlu0 %v319, 96
        %v326 = vpop.permute.xlu0 %325
        %v327 = vsel %vm262, %v317, 0
        %v329 = vsel %vm262, %v319, 0
        %v331 = vsel %vm262, %v324, 0
        %v333 = vsel %vm262, %v326, 0
        %335 = vmatpush.xpose.msra.mxu0 0.0
        %336 = vmatpush.xpose.msra.mxu0 0.0
        %337 = vmatpush.xpose.msra.mxu0 0.0
        %338 = vmatpush.xpose.msra.mxu0 0.0
        %339 = vmatpush.xpose.msra.mxu0 0.0
        %340 = vmatpush.xpose.msra.mxu0 0.0
        %341 = vmatpush.xpose.msra.mxu0 0.0
        %342 = vmatpush.xpose.msra.mxu0 0.0
        %343 = vmatpush.xpose.msra.mxu0 0.0
        %344 = vmatpush.xpose.msra.mxu0 0.0
        %345 = vmatpush.xpose.msra.mxu0 0.0
        %346 = vmatpush.xpose.msra.mxu0 0.0
        %347 = vmatpush.xpose.msra.mxu0 0.0
        %348 = vmatpush.xpose.msra.mxu0 0.0
        %349 = vmatpush.xpose.msra.mxu0 %v333
        %350 = vmatpush.xpose.msra.mxu0 %v331
        %351 = vmatmul.f32.gmra.mxu0 %v327
        %v352 = vpop.f32.mrf.mxu0
        %v353 = vadd.f32 0.0, %v352
        %354 = vmatmul.f32.gmra.mxu0 %v329
        %v355 = vpop.f32.mrf.mxu0
        %v356 = vadd.f32 0.0, %v355
        %357 = vdwg.mxu0
        %vm358 = vcmask 130048
        %v359 = vsel %vm358, %v353, -inf
        %360 = vmax.xlane.f32.xlu0 %v359
        %v361 = vpop.xlane.xlu0 %360
        %v362 = vsel %vm358, %v356, -inf
        %363 = vmax.xlane.f32.xlu0 %v362
        %v364 = vpop.xlane.xlu0 %363
        %v365 = vsub.f32 %v353, %v361
        %v366 = vsub.f32 %v356, %v364
        %v367 = vmul.f32 %v365, 1.442695
        %v368 = vpow.pop %v367
        %v369 = vmul.f32 %v366, 1.442695
        %v370 = vpow.pop %v369
        %v371 = vsel %vm358, %v368, 0.0
        %372 = vadd.xlane.f32.xlu0 %v371
        %v373 = vpop.xlane.xlu0 %372
        %v374 = vsel %vm358, %v370, 0.0
        %375 = vadd.xlane.f32.xlu0 %v374
        %v376 = vpop.xlane.xlu0 %375
        %v377 = vrcp.pop %v373
        %v378 = vrcp.pop %v376
        %v379 = vmul.f32 %v368, %v377
        %v380 = vmul.f32 %v370, %v378
        %381 = vrot.lane.b32.xlu0 %v317, 64
        %v382 = vpop.permute.xlu0 %381
        %383 = vrot.lane.b32.xlu0 %v319, 64
        %v384 = vpop.permute.xlu0 %383
        %v388 = vsel %vm358, %v379, 0
        %v391 = vsel %vm358, %v380, 0
        %393 = vmatpush.msra.mxu0 0.0
        %394 = vmatpush.msra.mxu0 0.0
        %395 = vmatpush.msra.mxu0 0.0
        %396 = vmatpush.msra.mxu0 0.0
        %397 = vmatpush.msra.mxu0 0.0
        %398 = vmatpush.msra.mxu0 0.0
        %399 = vmatpush.msra.mxu0 0.0
        %400 = vmatpush.msra.mxu0 0.0
        %401 = vmatpush.msra.mxu0 0.0
        %402 = vmatpush.msra.mxu0 0.0
        %403 = vmatpush.msra.mxu0 0.0
        %404 = vmatpush.msra.mxu0 0.0
        %405 = vmatpush.msra.mxu0 0.0
        %406 = vmatpush.msra.mxu0 0.0
        %407 = vmatpush.msra.mxu0 %v384
        %408 = vmatpush.msra.mxu0 %v382
        %409 = vmatmul.f32.gmra.mxu0 %v388
        %v410 = vpop.f32.mrf.mxu0
        %v411 = vadd.f32 0.0, %v410
        %412 = vmatmul.f32.gmra.mxu0 %v391
        %v413 = vpop.f32.mrf.mxu0
        %v414 = vadd.f32 0.0, %v413
        %415 = vdwg.mxu0
        %416 = vrot.lane.b32.xlu0 %v317, 120
        %v417 = vpop.permute.xlu0 %416
        %418 = vrot.lane.b32.xlu0 %v319, 120
        %v419 = vpop.permute.xlu0 %418
        %420 = vrot.lane.b32.xlu0 %v317, 88
        %v421 = vpop.permute.xlu0 %420
        %422 = vrot.lane.b32.xlu0 %v319, 88
        %v423 = vpop.permute.xlu0 %422
        %v424 = vsel %vm262, %v417, 0
        %v426 = vsel %vm262, %v419, 0
        %v428 = vsel %vm262, %v421, 0
        %v430 = vsel %vm262, %v423, 0
        %432 = vmatpush.xpose.msra.mxu0 0.0
        %433 = vmatpush.xpose.msra.mxu0 0.0
        %434 = vmatpush.xpose.msra.mxu0 0.0
        %435 = vmatpush.xpose.msra.mxu0 0.0
        %436 = vmatpush.xpose.msra.mxu0 0.0
        %437 = vmatpush.xpose.msra.mxu0 0.0
        %438 = vmatpush.xpose.msra.mxu0 0.0
        %439 = vmatpush.xpose.msra.mxu0 0.0
        %440 = vmatpush.xpose.msra.mxu0 0.0
        %441 = vmatpush.xpose.msra.mxu0 0.0
        %442 = vmatpush.xpose.msra.mxu0 0.0
        %443 = vmatpush.xpose.msra.mxu0 0.0
        %444 = vmatpush.xpose.msra.mxu0 0.0
        %445 = vmatpush.xpose.msra.mxu0 0.0
        %446 = vmatpush.xpose.msra.mxu0 %v430
        %447 = vmatpush.xpose.msra.mxu0 %v428
        %448 = vmatmul.f32.gmra.mxu0 %v424
        %v449 = vpop.f32.mrf.mxu0
        %v450 = vadd.f32 0.0, %v449
        %451 = vmatmul.f32.gmra.mxu0 %v426
        %v452 = vpop.f32.mrf.mxu0
        %v453 = vadd.f32 0.0, %v452
        %454 = vdwg.mxu0
        %v455 = vsel %vm358, %v450, -inf
        %456 = vmax.xlane.f32.xlu0 %v455
        %v457 = vpop.xlane.xlu0 %456
        %v458 = vsel %vm358, %v453, -inf
        %459 = vmax.xlane.f32.xlu0 %v458
        %v460 = vpop.xlane.xlu0 %459
        %v461 = vsub.f32 %v450, %v457
        %v462 = vsub.f32 %v453, %v460
        %v463 = vmul.f32 %v461, 1.442695
        %v464 = vpow.pop %v463
        %v465 = vmul.f32 %v462, 1.442695
        %v466 = vpow.pop %v465
        %v467 = vsel %vm358, %v464, 0.0
        %468 = vadd.xlane.f32.xlu0 %v467
        %v469 = vpop.xlane.xlu0 %468
        %v470 = vsel %vm358, %v466, 0.0
        %471 = vadd.xlane.f32.xlu0 %v470
        %v472 = vpop.xlane.xlu0 %471
        %v473 = vrcp.pop %v469
        %v474 = vrcp.pop %v472
        %v475 = vmul.f32 %v464, %v473
        %v476 = vmul.f32 %v466, %v474
        %477 = vrot.lane.b32.xlu0 %v317, 56
        %v478 = vpop.permute.xlu0 %477
        %479 = vrot.lane.b32.xlu0 %v319, 56
        %v480 = vpop.permute.xlu0 %479
        %v484 = vsel %vm358, %v475, 0
        %v487 = vsel %vm358, %v476, 0
        %489 = vmatpush.msra.mxu0 0.0
        %490 = vmatpush.msra.mxu0 0.0
        %491 = vmatpush.msra.mxu0 0.0
        %492 = vmatpush.msra.mxu0 0.0
        %493 = vmatpush.msra.mxu0 0.0
        %494 = vmatpush.msra.mxu0 0.0
        %495 = vmatpush.msra.mxu0 0.0
        %496 = vmatpush.msra.mxu0 0.0
        %497 = vmatpush.msra.mxu0 0.0
        %498 = vmatpush.msra.mxu0 0.0
        %499 = vmatpush.msra.mxu0 0.0
        %500 = vmatpush.msra.mxu0 0.0
        %501 = vmatpush.msra.mxu0 0.0
        %502 = vmatpush.msra.mxu0 0.0
        %503 = vmatpush.msra.mxu0 %v480
        %504 = vmatpush.msra.mxu0 %v478
        %505 = vmatmul.f32.gmra.mxu0 %v484
        %v506 = vpop.f32.mrf.mxu0
        %v507 = vadd.f32 0.0, %v506
        %508 = vmatmul.f32.gmra.mxu0 %v487
        %v509 = vpop.f32.mrf.mxu0
        %v510 = vadd.f32 0.0, %v509
        %511 = vdwg.mxu0
        %512 = vrot.lane.b32.xlu0 %v317, 112
        %v513 = vpop.permute.xlu0 %512
        %514 = vrot.lane.b32.xlu0 %v319, 112
        %v515 = vpop.permute.xlu0 %514
        %516 = vrot.lane.b32.xlu0 %v317, 80
        %v517 = vpop.permute.xlu0 %516
        %518 = vrot.lane.b32.xlu0 %v319, 80
        %v519 = vpop.permute.xlu0 %518
        %v520 = vsel %vm262, %v513, 0
        %v522 = vsel %vm262, %v515, 0
        %v524 = vsel %vm262, %v517, 0
        %v526 = vsel %vm262, %v519, 0
        %528 = vmatpush.xpose.msra.mxu0 0.0
        %529 = vmatpush.xpose.msra.mxu0 0.0
        %530 = vmatpush.xpose.msra.mxu0 0.0
        %531 = vmatpush.xpose.msra.mxu0 0.0
        %532 = vmatpush.xpose.msra.mxu0 0.0
        %533 = vmatpush.xpose.msra.mxu0 0.0
        %534 = vmatpush.xpose.msra.mxu0 0.0
        %535 = vmatpush.xpose.msra.mxu0 0.0
        %536 = vmatpush.xpose.msra.mxu0 0.0
        %537 = vmatpush.xpose.msra.mxu0 0.0
        %538 = vmatpush.xpose.msra.mxu0 0.0
        %539 = vmatpush.xpose.msra.mxu0 0.0
        %540 = vmatpush.xpose.msra.mxu0 0.0
        %541 = vmatpush.xpose.msra.mxu0 0.0
        %542 = vmatpush.xpose.msra.mxu0 %v526
        %543 = vmatpush.xpose.msra.mxu0 %v524
        %544 = vmatmul.f32.gmra.mxu0 %v520
        %v545 = vpop.f32.mrf.mxu0
        %v546 = vadd.f32 0.0, %v545
        %547 = vmatmul.f32.gmra.mxu0 %v522
        %v548 = vpop.f32.mrf.mxu0
        %v549 = vadd.f32 0.0, %v548
        %550 = vdwg.mxu0
        %v551 = vsel %vm358, %v546, -inf
        %552 = vmax.xlane.f32.xlu0 %v551
        %v553 = vpop.xlane.xlu0 %552
        %v554 = vsel %vm358, %v549, -inf
        %555 = vmax.xlane.f32.xlu0 %v554
        %v556 = vpop.xlane.xlu0 %555
        %v557 = vsub.f32 %v546, %v553
        %v558 = vsub.f32 %v549, %v556
        %v559 = vmul.f32 %v557, 1.442695
        %v560 = vpow.pop %v559
        %v561 = vmul.f32 %v558, 1.442695
        %v562 = vpow.pop %v561
        %v563 = vsel %vm358, %v560, 0.0
        %564 = vadd.xlane.f32.xlu0 %v563
        %v565 = vpop.xlane.xlu0 %564
        %v566 = vsel %vm358, %v562, 0.0
        %567 = vadd.xlane.f32.xlu0 %v566
        %v568 = vpop.xlane.xlu0 %567
        %v569 = vrcp.pop %v565
        %v570 = vrcp.pop %v568
        %v571 = vmul.f32 %v560, %v569
        %v572 = vmul.f32 %v562, %v570
        %573 = vrot.lane.b32.xlu0 %v317, 48
        %v574 = vpop.permute.xlu0 %573
        %575 = vrot.lane.b32.xlu0 %v319, 48
        %v576 = vpop.permute.xlu0 %575
        %v580 = vsel %vm358, %v571, 0
        %v583 = vsel %vm358, %v572, 0
        %585 = vmatpush.msra.mxu0 0.0
        %586 = vmatpush.msra.mxu0 0.0
        %587 = vmatpush.msra.mxu0 0.0
        %588 = vmatpush.msra.mxu0 0.0
        %589 = vmatpush.msra.mxu0 0.0
        %590 = vmatpush.msra.mxu0 0.0
        %591 = vmatpush.msra.mxu0 0.0
        %592 = vmatpush.msra.mxu0 0.0
        %593 = vmatpush.msra.mxu0 0.0
        %594 = vmatpush.msra.mxu0 0.0
        %595 = vmatpush.msra.mxu0 0.0
        %596 = vmatpush.msra.mxu0 0.0
        %597 = vmatpush.msra.mxu0 0.0
        %598 = vmatpush.msra.mxu0 0.0
        %599 = vmatpush.msra.mxu0 %v576
        %600 = vmatpush.msra.mxu0 %v574
        %601 = vmatmul.f32.gmra.mxu0 %v580
        %v602 = vpop.f32.mrf.mxu0
        %v603 = vadd.f32 0.0, %v602
        %604 = vmatmul.f32.gmra.mxu0 %v583
        %v605 = vpop.f32.mrf.mxu0
        %v606 = vadd.f32 0.0, %v605
        %607 = vdwg.mxu0
        %608 = vrot.lane.b32.xlu0 %v317, 104
        %v609 = vpop.permute.xlu0 %608
        %610 = vrot.lane.b32.xlu0 %v319, 104
        %v611 = vpop.permute.xlu0 %610
        %612 = vrot.lane.b32.xlu0 %v317, 72
        %v613 = vpop.permute.xlu0 %612
        %614 = vrot.lane.b32.xlu0 %v319, 72
        %v615 = vpop.permute.xlu0 %614
        %v616 = vsel %vm262, %v609, 0
        %v618 = vsel %vm262, %v611, 0
        %v620 = vsel %vm262, %v613, 0
        %v622 = vsel %vm262, %v615, 0
        %624 = vmatpush.xpose.msra.mxu0 0.0
        %625 = vmatpush.xpose.msra.mxu0 0.0
        %626 = vmatpush.xpose.msra.mxu0 0.0
        %627 = vmatpush.xpose.msra.mxu0 0.0
        %628 = vmatpush.xpose.msra.mxu0 0.0
        %629 = vmatpush.xpose.msra.mxu0 0.0
        %630 = vmatpush.xpose.msra.mxu0 0.0
        %631 = vmatpush.xpose.msra.mxu0 0.0
        %632 = vmatpush.xpose.msra.mxu0 0.0
        %633 = vmatpush.xpose.msra.mxu0 0.0
        %634 = vmatpush.xpose.msra.mxu0 0.0
        %635 = vmatpush.xpose.msra.mxu0 0.0
        %636 = vmatpush.xpose.msra.mxu0 0.0
        %637 = vmatpush.xpose.msra.mxu0 0.0
        %638 = vmatpush.xpose.msra.mxu0 %v622
        %639 = vmatpush.xpose.msra.mxu0 %v620
        %640 = vmatmul.f32.gmra.mxu0 %v616
        %v641 = vpop.f32.mrf.mxu0
        %v642 = vadd.f32 0.0, %v641
        %643 = vmatmul.f32.gmra.mxu0 %v618
        %v644 = vpop.f32.mrf.mxu0
        %v645 = vadd.f32 0.0, %v644
        %646 = vdwg.mxu0
        %v647 = vsel %vm358, %v642, -inf
        %648 = vmax.xlane.f32.xlu0 %v647
        %v649 = vpop.xlane.xlu0 %648
        %v650 = vsel %vm358, %v645, -inf
        %651 = vmax.xlane.f32.xlu0 %v650
        %v652 = vpop.xlane.xlu0 %651
        %v653 = vsub.f32 %v642, %v649
        %v654 = vsub.f32 %v645, %v652
        %v655 = vmul.f32 %v653, 1.442695
        %v656 = vpow.pop %v655
        %v657 = vmul.f32 %v654, 1.442695
        %v658 = vpow.pop %v657
        %v659 = vsel %vm358, %v656, 0.0
        %660 = vadd.xlane.f32.xlu0 %v659
        %v661 = vpop.xlane.xlu0 %660
        %v662 = vsel %vm358, %v658, 0.0
        %663 = vadd.xlane.f32.xlu0 %v662
        %v664 = vpop.xlane.xlu0 %663
        %v665 = vrcp.pop %v661
        %v666 = vrcp.pop %v664
        %v667 = vmul.f32 %v656, %v665
        %v668 = vmul.f32 %v658, %v666
        %669 = vrot.lane.b32.xlu0 %v317, 40
        %v670 = vpop.permute.xlu0 %669
        %671 = vrot.lane.b32.xlu0 %v319, 40
        %v672 = vpop.permute.xlu0 %671
        %v676 = vsel %vm358, %v667, 0
        %v679 = vsel %vm358, %v668, 0
        %681 = vmatpush.msra.mxu0 0.0
        %682 = vmatpush.msra.mxu0 0.0
        %683 = vmatpush.msra.mxu0 0.0
        %684 = vmatpush.msra.mxu0 0.0
        %685 = vmatpush.msra.mxu0 0.0
        %686 = vmatpush.msra.mxu0 0.0
        %687 = vmatpush.msra.mxu0 0.0
        %688 = vmatpush.msra.mxu0 0.0
        %689 = vmatpush.msra.mxu0 0.0
        %690 = vmatpush.msra.mxu0 0.0
        %691 = vmatpush.msra.mxu0 0.0
        %692 = vmatpush.msra.mxu0 0.0
        %693 = vmatpush.msra.mxu0 0.0
        %694 = vmatpush.msra.mxu0 0.0
        %695 = vmatpush.msra.mxu0 %v672
        %696 = vmatpush.msra.mxu0 %v670
        %697 = vmatmul.f32.gmra.mxu0 %v676
        %v698 = vpop.f32.mrf.mxu0
        %v699 = vadd.f32 0.0, %v698
        %700 = vmatmul.f32.gmra.mxu0 %v679
        %v701 = vpop.f32.mrf.mxu0
        %v702 = vadd.f32 0.0, %v701
        %703 = vdwg.mxu0
        %706 = vrot.lane.b32.xlu0 %v507, 8
        %v707 = vpop.permute.xlu0 %706
        %708 = vrot.lane.b32.xlu0 %v510, 8
        %v709 = vpop.permute.xlu0 %708
        %714 = vrot.lane.b32.xlu0 %v603, 16
        %v715 = vpop.permute.xlu0 %714
        %716 = vrot.lane.b32.xlu0 %v606, 16
        %v717 = vpop.permute.xlu0 %716
        %722 = vrot.lane.b32.xlu0 %v699, 24
        %v723 = vpop.permute.xlu0 %722
        %724 = vrot.lane.b32.xlu0 %v702, 24
        %v725 = vpop.permute.xlu0 %724
        %v728 = vsel %vm262, %v411, %v707
        %v729 = vsel %vm262, %v414, %v709
        %v730 = vsel %vm358, %v728, %v715
        %v731 = vsel %vm358, %v729, %v717
        %vm732 = vcmask 195584
        %v733 = vsel %vm732, %v730, %v723
        %v734 = vsel %vm732, %v731, %v725
        %v735 = vpack.c.bf16 %v734, %v733
        %736 = vrot.lane.b32.xlu0 %v299, 32
        %v737 = vpop.permute.xlu0 %736
        %738 = vrot.lane.b32.xlu0 %v300, 32
        %v739 = vpop.permute.xlu0 %738
        %743 = vrot.lane.b32.xlu0 %v290, 32
        %v744 = vpop.permute.xlu0 %743
        %v747 = vsel %vm303, %v735, 0
        %749 = vmatpush.bf16.msra.mxu0 0
        %750 = vmatpush.bf16.msra.mxu0 0
        %751 = vmatpush.bf16.msra.mxu0 0
        %752 = vmatpush.bf16.msra.mxu0 0
        %753 = vmatpush.bf16.msra.mxu0 0
        %754 = vmatpush.bf16.msra.mxu0 0
        %755 = vmatpush.bf16.msra.mxu0 %v739
        %756 = vmatpush.bf16.msra.mxu0 %v737
        %757 = vmatmul.bf16.gmra.mxu0 %v747
        %v758 = vpop.f32.mrf.mxu0
        %v759 = vadd.f32 %v744, %v758
        %v760 = vpop.f32.mrf.mxu0
        %v761 = vadd.f32 %v744, %v760
        %762 = vdwg.mxu0
        %v763 = vadd.f32 %v280, %v759
        %v764 = vadd.f32 %v282, %v761
        %v765 = vld [vmem:[#allocation5 + $0x1] sm:$0x1]
        %v766 = vld [vmem:[#allocation5 + $0x2] sm:$0x1]
        %v767 = vsel %vm303, %v763, 0.0
        %768 = vadd.xlane.f32.xlu0 %v767
        %v769 = vpop.xlane.xlu0 %768
        %v770 = vsel %vm303, %v764, 0.0
        %771 = vadd.xlane.f32.xlu0 %v770
        %v772 = vpop.xlane.xlu0 %771
        %v773 = vrcp.pop 32.0
        %v774 = vmul.f32 32.0, %v773
        %v775 = vsub.f32 1.0, %v774
        %v776 = vmul.f32 %v773, %v775
        %v777 = vadd.f32 %v773, %v776
        %vm778 = vweird.f32 %v773
        %v779 = vsel %vm778, %v773, %v777
        %v780 = vmul.f32 %v769, %v779
        %v781 = vmul.f32 %v772, %v779
        %v782 = vsub.f32 %v763, %v780
        %v783 = vsub.f32 %v764, %v781
        %v784 = vmul.f32 %v782, %v782
        %v785 = vmul.f32 %v783, %v783
        %v786 = vsel %vm303, %v784, 0.0
        %787 = vadd.xlane.f32.xlu0 %v786
        %v788 = vpop.xlane.xlu0 %787
        %v789 = vsel %vm303, %v785, 0.0
        %790 = vadd.xlane.f32.xlu0 %v789
        %v791 = vpop.xlane.xlu0 %790
        %v792 = vmul.f32 %v788, %v779
        %v793 = vmul.f32 %v791, %v779
        %v794 = vadd.f32 %v792, 1e-05
        %v795 = vadd.f32 %v793, 1e-05
        %v796 = vrsqrt.pop %v794
        %v797 = vmul.f32 %v796, %v794
        %v798 = vmul.f32 %v797, %v796
        %v799 = vmul.f32 0.5, %v798
        %v800 = vsub.f32 1.5, %v799
        %v801 = vmul.f32 %v796, %v800
        %vm802 = vweird.f32 %v794
        %vm803 = vweird.f32 %v796
        %vm804 = vmor %vm802, %vm803
        %v805 = vsel %vm804, %v796, %v801
        %v806 = vrsqrt.pop %v795
        %v807 = vmul.f32 %v806, %v795
        %v808 = vmul.f32 %v807, %v806
        %v809 = vmul.f32 0.5, %v808
        %v810 = vsub.f32 1.5, %v809
        %v811 = vmul.f32 %v806, %v810
        %vm812 = vweird.f32 %v795
        %vm813 = vweird.f32 %v806
        %vm814 = vmor %vm812, %vm813
        %v815 = vsel %vm814, %v806, %v811
        %v816 = vmul.f32 %v782, %v805
        %v817 = vmul.f32 %v783, %v815
        %v818 = vperm.slane %v765, 0
        %v819 = vmul.f32 %v816, %v818
        %v820 = vmul.f32 %v817, %v818
        %v821 = vperm.slane %v766, 0
        %v822 = vadd.f32 %v819, %v821
        %v823 = vadd.f32 %v820, %v821
        %v824 = vpack.c.bf16 %v823, %v822
        %v825 = vld [vmem:[#allocation2 + $0x18] sm:$0xf]
        %v826 = vld [vmem:[#allocation2 + $0x1c] sm:$0xf]
        %v827 = vld [vmem:[#allocation2 + $0x20] sm:$0xf]
        %v828 = vld [vmem:[#allocation2 + $0x24] sm:$0xf]
        %v829 = vld [vmem:[#allocation5 + $0x3] sm:$0x1]
        %v830 = vperm.slane %v829, 0
        %v835 = vunpack.c.l.b16 %v825
        %v836 = vunpack.c.l.b16 %v826
        %v837 = vunpack.c.l.b16 %v827
        %v838 = vunpack.c.l.b16 %v828
        %v839 = vpack.c.b16 %v836, %v835
        %v840 = vpack.c.b16 %v838, %v837
        %v844 = vsel %vm303, %v824, 0
        %846 = vmatpush.bf16.msra.mxu0 0
        %847 = vmatpush.bf16.msra.mxu0 0
        %848 = vmatpush.bf16.msra.mxu0 0
        %849 = vmatpush.bf16.msra.mxu0 0
        %850 = vmatpush.bf16.msra.mxu0 0
        %851 = vmatpush.bf16.msra.mxu0 0
        %852 = vmatpush.bf16.msra.mxu0 %v840
        %853 = vmatpush.bf16.msra.mxu0 %v839
        %854 = vmatmul.bf16.gmra.mxu0 %v844
        %v855 = vpop.f32.mrf.mxu0
        %v856 = vadd.f32 %v830, %v855
        %v857 = vpop.f32.mrf.mxu0
        %v858 = vadd.f32 %v830, %v857
        %859 = vdwg.mxu0
        %v860 = vmax.f32 %v856, 0.0
        %v861 = vmax.f32 %v858, 0.0
        %v862 = vpack.c.bf16 %v861, %v860
        %v863 = vld [vmem:[#allocation2 + $0x28] sm:$0xf]
        %v864 = vld [vmem:[#allocation2 + $0x2c] sm:$0xf]
        %v865 = vld [vmem:[#allocation2 + $0x30] sm:$0xf]
        %v866 = vld [vmem:[#allocation2 + $0x34] sm:$0xf]
        %v867 = vld [vmem:[#allocation2 + $0x38] sm:$0xf]
        %v868 = vld [vmem:[#allocation2 + $0x3c] sm:$0xf]
        %v869 = vld [vmem:[#allocation2 + $0x40] sm:$0xf]
        %v870 = vld [vmem:[#allocation2 + $0x44] sm:$0xf]
        %v871 = vld [vmem:[#allocation5 + $0x4] sm:$0x1]
        %v872 = vperm.slane %v871, 0
        %v881 = vunpack.c.l.b16 %v863
        %v882 = vunpack.c.l.b16 %v864
        %v883 = vunpack.c.l.b16 %v865
        %v884 = vunpack.c.l.b16 %v866
        %v885 = vunpack.c.l.b16 %v867
        %v886 = vunpack.c.l.b16 %v868
        %v887 = vunpack.c.l.b16 %v869
        %v888 = vunpack.c.l.b16 %v870
        %v889 = vpack.c.b16 %v882, %v881
        %v890 = vpack.c.b16 %v884, %v883
        %v891 = vpack.c.b16 %v886, %v885
        %v892 = vpack.c.b16 %v888, %v887
        %vm897 = vcmask 523264
        %v899 = vsel %vm897, %v862, 0
        %901 = vmatpush.bf16.msra.mxu0 0
        %902 = vmatpush.bf16.msra.mxu0 0
        %903 = vmatpush.bf16.msra.mxu0 0
        %904 = vmatpush.bf16.msra.mxu0 0
        %905 = vmatpush.bf16.msra.mxu0 %v892
        %906 = vmatpush.bf16.msra.mxu0 %v891
        %907 = vmatpush.bf16.msra.mxu0 %v890
        %908 = vmatpush.bf16.msra.mxu0 %v889
        %909 = vmatmul.bf16.gmra.mxu0 %v899
        %v910 = vpop.f32.mrf.mxu0
        %v911 = vadd.f32 %v872, %v910
        %v912 = vpop.f32.mrf.mxu0
        %v913 = vadd.f32 %v872, %v912
        %914 = vdwg.mxu0
        %v915 = vadd.f32 %v822, %v911
        %v916 = vadd.f32 %v823, %v913
        %v917 = vld [vmem:[#allocation5 + $0x5] sm:$0x1]
        %v918 = vld [vmem:[#allocation5 + $0x6] sm:$0x1]
        %v919 = vsel %vm303, %v915, 0.0
        %920 = vadd.xlane.f32.xlu0 %v919
        %v921 = vpop.xlane.xlu0 %920
        %v922 = vsel %vm303, %v916, 0.0
        %923 = vadd.xlane.f32.xlu0 %v922
        %v924 = vpop.xlane.xlu0 %923
        %v925 = vmul.f32 %v921, %v779
        %v926 = vmul.f32 %v924, %v779
        %v927 = vsub.f32 %v915, %v925
        %v928 = vsub.f32 %v916, %v926
        %v929 = vmul.f32 %v927, %v927
        %v930 = vmul.f32 %v928, %v928
        %v931 = vsel %vm303, %v929, 0.0
        %932 = vadd.xlane.f32.xlu0 %v931
        %v933 = vpop.xlane.xlu0 %932
        %v934 = vsel %vm303, %v930, 0.0
        %935 = vadd.xlane.f32.xlu0 %v934
        %v936 = vpop.xlane.xlu0 %935
        %v937 = vmul.f32 %v933, %v779
        %v938 = vmul.f32 %v936, %v779
        %v939 = vadd.f32 %v937, 1e-05
        %v940 = vadd.f32 %v938, 1e-05
        %v941 = vrsqrt.pop %v939
        %v942 = vmul.f32 %v941, %v939
        %v943 = vmul.f32 %v942, %v941
        %v944 = vmul.f32 0.5, %v943
        %v945 = vsub.f32 1.5, %v944
        %v946 = vmul.f32 %v941, %v945
        %vm947 = vweird.f32 %v939
        %vm948 = vweird.f32 %v941
        %vm949 = vmor %vm947, %vm948
        %v950 = vsel %vm949, %v941, %v946
        %v951 = vrsqrt.pop %v940
        %v952 = vmul.f32 %v951, %v940
        %v953 = vmul.f32 %v952, %v951
        %v954 = vmul.f32 0.5, %v953
        %v955 = vsub.f32 1.5, %v954
        %v956 = vmul.f32 %v951, %v955
        %vm957 = vweird.f32 %v940
        %vm958 = vweird.f32 %v951
        %vm959 = vmor %vm957, %vm958
        %v960 = vsel %vm959, %v951, %v956
        %v961 = vmul.f32 %v927, %v950
        %v962 = vmul.f32 %v928, %v960
        %v963 = vperm.slane %v917, 0
        %v964 = vmul.f32 %v961, %v963
        %v965 = vmul.f32 %v962, %v963
        %v966 = vperm.slane %v918, 0
        %v967 = vadd.f32 %v964, %v966
        %v968 = vadd.f32 %v965, %v966
        %v969 = vpack.c.bf16 %v968, %v967
        %v970 = vld [vmem:[#allocation2 + $0x48] sm:$0xf]
        %v971 = vld [vmem:[#allocation2 + $0x4c] sm:$0xf]
        %v972 = vld [vmem:[#allocation2 + $0x50] sm:$0xf]
        %v973 = vld [vmem:[#allocation2 + $0x54] sm:$0xf]
        %v974 = vld [vmem:[#allocation5 + $0x7] sm:$0x1]
        %v975 = vperm.slane %v974, 0
        %v980 = vunpack.c.l.b16 %v970
        %v981 = vunpack.c.l.b16 %v971
        %v982 = vunpack.c.l.b16 %v972
        %v983 = vunpack.c.l.b16 %v973
        %v984 = vpack.c.b16 %v981, %v980
        %v985 = vpack.c.b16 %v983, %v982
        %v989 = vsel %vm303, %v969, 0
        %991 = vmatpush.bf16.msra.mxu0 0
        %992 = vmatpush.bf16.msra.mxu0 0
        %993 = vmatpush.bf16.msra.mxu0 0
        %994 = vmatpush.bf16.msra.mxu0 0
        %995 = vmatpush.bf16.msra.mxu0 0
        %996 = vmatpush.bf16.msra.mxu0 0
        %997 = vmatpush.bf16.msra.mxu0 %v985
        %998 = vmatpush.bf16.msra.mxu0 %v984
        %999 = vmatmul.bf16.gmra.mxu0 %v989
        %v1000 = vpop.f32.mrf.mxu0
        %v1001 = vadd.f32 %v975, %v1000
        %v1002 = vpop.f32.mrf.mxu0
        %v1003 = vadd.f32 %v975, %v1002
        %1004 = vdwg.mxu0
        %1007 = vrot.lane.b32.xlu0 %v1001, 96
        %v1008 = vpop.permute.xlu0 %1007
        %1009 = vrot.lane.b32.xlu0 %v1003, 96
        %v1010 = vpop.permute.xlu0 %1009
        %v1011 = vsel %vm262, %v1001, 0
        %v1013 = vsel %vm262, %v1003, 0
        %v1015 = vsel %vm262, %v1008, 0
        %v1017 = vsel %vm262, %v1010, 0
        %1019 = vmatpush.xpose.msra.mxu0 0.0
        %1020 = vmatpush.xpose.msra.mxu0 0.0
        %1021 = vmatpush.xpose.msra.mxu0 0.0
        %1022 = vmatpush.xpose.msra.mxu0 0.0
        %1023 = vmatpush.xpose.msra.mxu0 0.0
        %1024 = vmatpush.xpose.msra.mxu0 0.0
        %1025 = vmatpush.xpose.msra.mxu0 0.0
        %1026 = vmatpush.xpose.msra.mxu0 0.0
        %1027 = vmatpush.xpose.msra.mxu0 0.0
        %1028 = vmatpush.xpose.msra.mxu0 0.0
        %1029 = vmatpush.xpose.msra.mxu0 0.0
        %1030 = vmatpush.xpose.msra.mxu0 0.0
        %1031 = vmatpush.xpose.msra.mxu0 0.0
        %1032 = vmatpush.xpose.msra.mxu0 0.0
        %1033 = vmatpush.xpose.msra.mxu0 %v1017
        %1034 = vmatpush.xpose.msra.mxu0 %v1015
        %1035 = vmatmul.f32.gmra.mxu0 %v1011
        %v1036 = vpop.f32.mrf.mxu0
        %v1037 = vadd.f32 0.0, %v1036
        %1038 = vmatmul.f32.gmra.mxu0 %v1013
        %v1039 = vpop.f32.mrf.mxu0
        %v1040 = vadd.f32 0.0, %v1039
        %1041 = vdwg.mxu0
        %v1042 = vsel %vm358, %v1037, -inf
        %1043 = vmax.xlane.f32.xlu0 %v1042
        %v1044 = vpop.xlane.xlu0 %1043
        %v1045 = vsel %vm358, %v1040, -inf
        %1046 = vmax.xlane.f32.xlu0 %v1045
        %v1047 = vpop.xlane.xlu0 %1046
        %v1048 = vsub.f32 %v1037, %v1044
        %v1049 = vsub.f32 %v1040, %v1047
        %v1050 = vmul.f32 %v1048, 1.442695
        %v1051 = vpow.pop %v1050
        %v1052 = vmul.f32 %v1049, 1.442695
        %v1053 = vpow.pop %v1052
        %v1054 = vsel %vm358, %v1051, 0.0
        %1055 = vadd.xlane.f32.xlu0 %v1054
        %v1056 = vpop.xlane.xlu0 %1055
        %v1057 = vsel %vm358, %v1053, 0.0
        %1058 = vadd.xlane.f32.xlu0 %v1057
        %v1059 = vpop.xlane.xlu0 %1058
        %v1060 = vrcp.pop %v1056
        %v1061 = vrcp.pop %v1059
        %v1062 = vmul.f32 %v1051, %v1060
        %v1063 = vmul.f32 %v1053, %v1061
        %1064 = vrot.lane.b32.xlu0 %v1001, 64
        %v1065 = vpop.permute.xlu0 %1064
        %1066 = vrot.lane.b32.xlu0 %v1003, 64
        %v1067 = vpop.permute.xlu0 %1066
        %v1071 = vsel %vm358, %v1062, 0
        %v1074 = vsel %vm358, %v1063, 0
        %1076 = vmatpush.msra.mxu0 0.0
        %1077 = vmatpush.msra.mxu0 0.0
        %1078 = vmatpush.msra.mxu0 0.0
        %1079 = vmatpush.msra.mxu0 0.0
        %1080 = vmatpush.msra.mxu0 0.0
        %1081 = vmatpush.msra.mxu0 0.0
        %1082 = vmatpush.msra.mxu0 0.0
        %1083 = vmatpush.msra.mxu0 0.0
        %1084 = vmatpush.msra.mxu0 0.0
        %1085 = vmatpush.msra.mxu0 0.0
        %1086 = vmatpush.msra.mxu0 0.0
        %1087 = vmatpush.msra.mxu0 0.0
        %1088 = vmatpush.msra.mxu0 0.0
        %1089 = vmatpush.msra.mxu0 0.0
        %1090 = vmatpush.msra.mxu0 %v1067
        %1091 = vmatpush.msra.mxu0 %v1065
        %1092 = vmatmul.f32.gmra.mxu0 %v1071
        %v1093 = vpop.f32.mrf.mxu0
        %v1094 = vadd.f32 0.0, %v1093
        %1095 = vmatmul.f32.gmra.mxu0 %v1074
        %v1096 = vpop.f32.mrf.mxu0
        %v1097 = vadd.f32 0.0, %v1096
        %1098 = vdwg.mxu0
        %1099 = vrot.lane.b32.xlu0 %v1001, 120
        %v1100 = vpop.permute.xlu0 %1099
        %1101 = vrot.lane.b32.xlu0 %v1003, 120
        %v1102 = vpop.permute.xlu0 %1101
        %1103 = vrot.lane.b32.xlu0 %v1001, 88
        %v1104 = vpop.permute.xlu0 %1103
        %1105 = vrot.lane.b32.xlu0 %v1003, 88
        %v1106 = vpop.permute.xlu0 %1105
        %v1107 = vsel %vm262, %v1100, 0
        %v1109 = vsel %vm262, %v1102, 0
        %v1111 = vsel %vm262, %v1104, 0
        %v1113 = vsel %vm262, %v1106, 0
        %1115 = vmatpush.xpose.msra.mxu0 0.0
        %1116 = vmatpush.xpose.msra.mxu0 0.0
        %1117 = vmatpush.xpose.msra.mxu0 0.0
        %1118 = vmatpush.xpose.msra.mxu0 0.0
        %1119 = vmatpush.xpose.msra.mxu0 0.0
        %1120 = vmatpush.xpose.msra.mxu0 0.0
        %1121 = vmatpush.xpose.msra.mxu0 0.0
        %1122 = vmatpush.xpose.msra.mxu0 0.0
        %1123 = vmatpush.xpose.msra.mxu0 0.0
        %1124 = vmatpush.xpose.msra.mxu0 0.0
        %1125 = vmatpush.xpose.msra.mxu0 0.0
        %1126 = vmatpush.xpose.msra.mxu0 0.0
        %1127 = vmatpush.xpose.msra.mxu0 0.0
        %1128 = vmatpush.xpose.msra.mxu0 0.0
        %1129 = vmatpush.xpose.msra.mxu0 %v1113
        %1130 = vmatpush.xpose.msra.mxu0 %v1111
        %1131 = vmatmul.f32.gmra.mxu0 %v1107
        %v1132 = vpop.f32.mrf.mxu0
        %v1133 = vadd.f32 0.0, %v1132
        %1134 = vmatmul.f32.gmra.mxu0 %v1109
        %v1135 = vpop.f32.mrf.mxu0
        %v1136 = vadd.f32 0.0, %v1135
        %1137 = vdwg.mxu0
        %v1138 = vsel %vm358, %v1133, -inf
        %1139 = vmax.xlane.f32.xlu0 %v1138
        %v1140 = vpop.xlane.xlu0 %1139
        %v1141 = vsel %vm358, %v1136, -inf
        %1142 = vmax.xlane.f32.xlu0 %v1141
        %v1143 = vpop.xlane.xlu0 %1142
        %v1144 = vsub.f32 %v1133, %v1140
        %v1145 = vsub.f32 %v1136, %v1143
        %v1146 = vmul.f32 %v1144, 1.442695
        %v1147 = vpow.pop %v1146
        %v1148 = vmul.f32 %v1145, 1.442695
        %v1149 = vpow.pop %v1148
        %v1150 = vsel %vm358, %v1147, 0.0
        %1151 = vadd.xlane.f32.xlu0 %v1150
        %v1152 = vpop.xlane.xlu0 %1151
        %v1153 = vsel %vm358, %v1149, 0.0
        %1154 = vadd.xlane.f32.xlu0 %v1153
        %v1155 = vpop.xlane.xlu0 %1154
        %v1156 = vrcp.pop %v1152
        %v1157 = vrcp.pop %v1155
        %v1158 = vmul.f32 %v1147, %v1156
        %v1159 = vmul.f32 %v1149, %v1157
        %1160 = vrot.lane.b32.xlu0 %v1001, 56
        %v1161 = vpop.permute.xlu0 %1160
        %1162 = vrot.lane.b32.xlu0 %v1003, 56
        %v1163 = vpop.permute.xlu0 %1162
        %v1167 = vsel %vm358, %v1158, 0
        %v1170 = vsel %vm358, %v1159, 0
        %1172 = vmatpush.msra.mxu0 0.0
        %1173 = vmatpush.msra.mxu0 0.0
        %1174 = vmatpush.msra.mxu0 0.0
        %1175 = vmatpush.msra.mxu0 0.0
        %1176 = vmatpush.msra.mxu0 0.0
        %1177 = vmatpush.msra.mxu0 0.0
        %1178 = vmatpush.msra.mxu0 0.0
        %1179 = vmatpush.msra.mxu0 0.0
        %1180 = vmatpush.msra.mxu0 0.0
        %1181 = vmatpush.msra.mxu0 0.0
        %1182 = vmatpush.msra.mxu0 0.0
        %1183 = vmatpush.msra.mxu0 0.0
        %1184 = vmatpush.msra.mxu0 0.0
        %1185 = vmatpush.msra.mxu0 0.0
        %1186 = vmatpush.msra.mxu0 %v1163
        %1187 = vmatpush.msra.mxu0 %v1161
        %1188 = vmatmul.f32.gmra.mxu0 %v1167
        %v1189 = vpop.f32.mrf.mxu0
        %v1190 = vadd.f32 0.0, %v1189
        %1191 = vmatmul.f32.gmra.mxu0 %v1170
        %v1192 = vpop.f32.mrf.mxu0
        %v1193 = vadd.f32 0.0, %v1192
        %1194 = vdwg.mxu0
        %1195 = vrot.lane.b32.xlu0 %v1001, 112
        %v1196 = vpop.permute.xlu0 %1195
        %1197 = vrot.lane.b32.xlu0 %v1003, 112
        %v1198 = vpop.permute.xlu0 %1197
        %1199 = vrot.lane.b32.xlu0 %v1001, 80
        %v1200 = vpop.permute.xlu0 %1199
        %1201 = vrot.lane.b32.xlu0 %v1003, 80
        %v1202 = vpop.permute.xlu0 %1201
        %v1203 = vsel %vm262, %v1196, 0
        %v1205 = vsel %vm262, %v1198, 0
        %v1207 = vsel %vm262, %v1200, 0
        %v1209 = vsel %vm262, %v1202, 0
        %1211 = vmatpush.xpose.msra.mxu0 0.0
        %1212 = vmatpush.xpose.msra.mxu0 0.0
        %1213 = vmatpush.xpose.msra.mxu0 0.0
        %1214 = vmatpush.xpose.msra.mxu0 0.0
        %1215 = vmatpush.xpose.msra.mxu0 0.0
        %1216 = vmatpush.xpose.msra.mxu0 0.0
        %1217 = vmatpush.xpose.msra.mxu0 0.0
        %1218 = vmatpush.xpose.msra.mxu0 0.0
        %1219 = vmatpush.xpose.msra.mxu0 0.0
        %1220 = vmatpush.xpose.msra.mxu0 0.0
        %1221 = vmatpush.xpose.msra.mxu0 0.0
        %1222 = vmatpush.xpose.msra.mxu0 0.0
        %1223 = vmatpush.xpose.msra.mxu0 0.0
        %1224 = vmatpush.xpose.msra.mxu0 0.0
        %1225 = vmatpush.xpose.msra.mxu0 %v1209
        %1226 = vmatpush.xpose.msra.mxu0 %v1207
        %1227 = vmatmul.f32.gmra.mxu0 %v1203
        %v1228 = vpop.f32.mrf.mxu0
        %v1229 = vadd.f32 0.0, %v1228
        %1230 = vmatmul.f32.gmra.mxu0 %v1205
        %v1231 = vpop.f32.mrf.mxu0
        %v1232 = vadd.f32 0.0, %v1231
        %1233 = vdwg.mxu0
        %v1234 = vsel %vm358, %v1229, -inf
        %1235 = vmax.xlane.f32.xlu0 %v1234
        %v1236 = vpop.xlane.xlu0 %1235
        %v1237 = vsel %vm358, %v1232, -inf
        %1238 = vmax.xlane.f32.xlu0 %v1237
        %v1239 = vpop.xlane.xlu0 %1238
        %v1240 = vsub.f32 %v1229, %v1236
        %v1241 = vsub.f32 %v1232, %v1239
        %v1242 = vmul.f32 %v1240, 1.442695
        %v1243 = vpow.pop %v1242
        %v1244 = vmul.f32 %v1241, 1.442695
        %v1245 = vpow.pop %v1244
        %v1246 = vsel %vm358, %v1243, 0.0
        %1247 = vadd.xlane.f32.xlu0 %v1246
        %v1248 = vpop.xlane.xlu0 %1247
        %v1249 = vsel %vm358, %v1245, 0.0
        %1250 = vadd.xlane.f32.xlu0 %v1249
        %v1251 = vpop.xlane.xlu0 %1250
        %v1252 = vrcp.pop %v1248
        %v1253 = vrcp.pop %v1251
        %v1254 = vmul.f32 %v1243, %v1252
        %v1255 = vmul.f32 %v1245, %v1253
        %1256 = vrot.lane.b32.xlu0 %v1001, 48
        %v1257 = vpop.permute.xlu0 %1256
        %1258 = vrot.lane.b32.xlu0 %v1003, 48
        %v1259 = vpop.permute.xlu0 %1258
        %v1263 = vsel %vm358, %v1254, 0
        %v1266 = vsel %vm358, %v1255, 0
        %1268 = vmatpush.msra.mxu0 0.0
        %1269 = vmatpush.msra.mxu0 0.0
        %1270 = vmatpush.msra.mxu0 0.0
        %1271 = vmatpush.msra.mxu0 0.0
        %1272 = vmatpush.msra.mxu0 0.0
        %1273 = vmatpush.msra.mxu0 0.0
        %1274 = vmatpush.msra.mxu0 0.0
        %1275 = vmatpush.msra.mxu0 0.0
        %1276 = vmatpush.msra.mxu0 0.0
        %1277 = vmatpush.msra.mxu0 0.0
        %1278 = vmatpush.msra.mxu0 0.0
        %1279 = vmatpush.msra.mxu0 0.0
        %1280 = vmatpush.msra.mxu0 0.0
        %1281 = vmatpush.msra.mxu0 0.0
        %1282 = vmatpush.msra.mxu0 %v1259
        %1283 = vmatpush.msra.mxu0 %v1257
        %1284 = vmatmul.f32.gmra.mxu0 %v1263
        %v1285 = vpop.f32.mrf.mxu0
        %v1286 = vadd.f32 0.0, %v1285
        %1287 = vmatmul.f32.gmra.mxu0 %v1266
        %v1288 = vpop.f32.mrf.mxu0
        %v1289 = vadd.f32 0.0, %v1288
        %1290 = vdwg.mxu0
        %1291 = vrot.lane.b32.xlu0 %v1001, 104
        %v1292 = vpop.permute.xlu0 %1291
        %1293 = vrot.lane.b32.xlu0 %v1003, 104
        %v1294 = vpop.permute.xlu0 %1293
        %1295 = vrot.lane.b32.xlu0 %v1001, 72
        %v1296 = vpop.permute.xlu0 %1295
        %1297 = vrot.lane.b32.xlu0 %v1003, 72
        %v1298 = vpop.permute.xlu0 %1297
        %v1299 = vsel %vm262, %v1292, 0
        %v1301 = vsel %vm262, %v1294, 0
        %v1303 = vsel %vm262, %v1296, 0
        %v1305 = vsel %vm262, %v1298, 0
        %1307 = vmatpush.xpose.msra.mxu0 0.0
        %1308 = vmatpush.xpose.msra.mxu0 0.0
        %1309 = vmatpush.xpose.msra.mxu0 0.0
        %1310 = vmatpush.xpose.msra.mxu0 0.0
        %1311 = vmatpush.xpose.msra.mxu0 0.0
        %1312 = vmatpush.xpose.msra.mxu0 0.0
        %1313 = vmatpush.xpose.msra.mxu0 0.0
        %1314 = vmatpush.xpose.msra.mxu0 0.0
        %1315 = vmatpush.xpose.msra.mxu0 0.0
        %1316 = vmatpush.xpose.msra.mxu0 0.0
        %1317 = vmatpush.xpose.msra.mxu0 0.0
        %1318 = vmatpush.xpose.msra.mxu0 0.0
        %1319 = vmatpush.xpose.msra.mxu0 0.0
        %1320 = vmatpush.xpose.msra.mxu0 0.0
        %1321 = vmatpush.xpose.msra.mxu0 %v1305
        %1322 = vmatpush.xpose.msra.mxu0 %v1303
        %1323 = vmatmul.f32.gmra.mxu0 %v1299
        %v1324 = vpop.f32.mrf.mxu0
        %v1325 = vadd.f32 0.0, %v1324
        %1326 = vmatmul.f32.gmra.mxu0 %v1301
        %v1327 = vpop.f32.mrf.mxu0
        %v1328 = vadd.f32 0.0, %v1327
        %1329 = vdwg.mxu0
        %v1330 = vsel %vm358, %v1325, -inf
        %1331 = vmax.xlane.f32.xlu0 %v1330
        %v1332 = vpop.xlane.xlu0 %1331
        %v1333 = vsel %vm358, %v1328, -inf
        %1334 = vmax.xlane.f32.xlu0 %v1333
        %v1335 = vpop.xlane.xlu0 %1334
        %v1336 = vsub.f32 %v1325, %v1332
        %v1337 = vsub.f32 %v1328, %v1335
        %v1338 = vmul.f32 %v1336, 1.442695
        %v1339 = vpow.pop %v1338
        %v1340 = vmul.f32 %v1337, 1.442695
        %v1341 = vpow.pop %v1340
        %v1342 = vsel %vm358, %v1339, 0.0
        %1343 = vadd.xlane.f32.xlu0 %v1342
        %v1344 = vpop.xlane.xlu0 %1343
        %v1345 = vsel %vm358, %v1341, 0.0
        %1346 = vadd.xlane.f32.xlu0 %v1345
        %v1347 = vpop.xlane.xlu0 %1346
        %v1348 = vrcp.pop %v1344
        %v1349 = vrcp.pop %v1347
        %v1350 = vmul.f32 %v1339, %v1348
        %v1351 = vmul.f32 %v1341, %v1349
        %1352 = vrot.lane.b32.xlu0 %v1001, 40
        %v1353 = vpop.permute.xlu0 %1352
        %1354 = vrot.lane.b32.xlu0 %v1003, 40
        %v1355 = vpop.permute.xlu0 %1354
        %v1359 = vsel %vm358, %v1350, 0
        %v1362 = vsel %vm358, %v1351, 0
        %1364 = vmatpush.msra.mxu0 0.0
        %1365 = vmatpush.msra.mxu0 0.0
        %1366 = vmatpush.msra.mxu0 0.0
        %1367 = vmatpush.msra.mxu0 0.0
        %1368 = vmatpush.msra.mxu0 0.0
        %1369 = vmatpush.msra.mxu0 0.0
        %1370 = vmatpush.msra.mxu0 0.0
        %1371 = vmatpush.msra.mxu0 0.0
        %1372 = vmatpush.msra.mxu0 0.0
        %1373 = vmatpush.msra.mxu0 0.0
        %1374 = vmatpush.msra.mxu0 0.0
        %1375 = vmatpush.msra.mxu0 0.0
        %1376 = vmatpush.msra.mxu0 0.0
        %1377 = vmatpush.msra.mxu0 0.0
        %1378 = vmatpush.msra.mxu0 %v1355
        %1379 = vmatpush.msra.mxu0 %v1353
        %1380 = vmatmul.f32.gmra.mxu0 %v1359
        %v1381 = vpop.f32.mrf.mxu0
        %v1382 = vadd.f32 0.0, %v1381
        %1383 = vmatmul.f32.gmra.mxu0 %v1362
        %v1384 = vpop.f32.mrf.mxu0
        %v1385 = vadd.f32 0.0, %v1384
        %1386 = vdwg.mxu0
        %1389 = vrot.lane.b32.xlu0 %v1190, 8
        %v1390 = vpop.permute.xlu0 %1389
        %1391 = vrot.lane.b32.xlu0 %v1193, 8
        %v1392 = vpop.permute.xlu0 %1391
        %1397 = vrot.lane.b32.xlu0 %v1286, 16
        %v1398 = vpop.permute.xlu0 %1397
        %1399 = vrot.lane.b32.xlu0 %v1289, 16
        %v1400 = vpop.permute.xlu0 %1399
        %1405 = vrot.lane.b32.xlu0 %v1382, 24
        %v1406 = vpop.permute.xlu0 %1405
        %1407 = vrot.lane.b32.xlu0 %v1385, 24
        %v1408 = vpop.permute.xlu0 %1407
        %v1411 = vsel %vm262, %v1094, %v1390
        %v1412 = vsel %vm262, %v1097, %v1392
        %v1413 = vsel %vm358, %v1411, %v1398
        %v1414 = vsel %vm358, %v1412, %v1400
        %v1415 = vsel %vm732, %v1413, %v1406
        %v1416 = vsel %vm732, %v1414, %v1408
        %v1417 = vpack.c.bf16 %v1416, %v1415
        %1418 = vrot.lane.b32.xlu0 %v984, 32
        %v1419 = vpop.permute.xlu0 %1418
        %1420 = vrot.lane.b32.xlu0 %v985, 32
        %v1421 = vpop.permute.xlu0 %1420
        %1425 = vrot.lane.b32.xlu0 %v975, 32
        %v1426 = vpop.permute.xlu0 %1425
        %v1429 = vsel %vm303, %v1417, 0
        %1431 = vmatpush.bf16.msra.mxu0 0
        %1432 = vmatpush.bf16.msra.mxu0 0
        %1433 = vmatpush.bf16.msra.mxu0 0
        %1434 = vmatpush.bf16.msra.mxu0 0
        %1435 = vmatpush.bf16.msra.mxu0 0
        %1436 = vmatpush.bf16.msra.mxu0 0
        %1437 = vmatpush.bf16.msra.mxu0 %v1421
        %1438 = vmatpush.bf16.msra.mxu0 %v1419
        %1439 = vmatmul.bf16.gmra.mxu0 %v1429
        %v1440 = vpop.f32.mrf.mxu0
        %v1441 = vadd.f32 %v1426, %v1440
        %v1442 = vpop.f32.mrf.mxu0
        %v1443 = vadd.f32 %v1426, %v1442
        %1444 = vdwg.mxu0
        %v1445 = vadd.f32 %v967, %v1441
        %v1446 = vadd.f32 %v968, %v1443
        %v1447 = vld [vmem:[#allocation5 + $0x8] sm:$0x1]
        %v1448 = vld [vmem:[#allocation5 + $0x9] sm:$0x1]
        %v1449 = vsel %vm303, %v1445, 0.0
        %1450 = vadd.xlane.f32.xlu0 %v1449
        %v1451 = vpop.xlane.xlu0 %1450
        %v1452 = vsel %vm303, %v1446, 0.0
        %1453 = vadd.xlane.f32.xlu0 %v1452
        %v1454 = vpop.xlane.xlu0 %1453
        %v1455 = vmul.f32 %v1451, %v779
        %v1456 = vmul.f32 %v1454, %v779
        %v1457 = vsub.f32 %v1445, %v1455
        %v1458 = vsub.f32 %v1446, %v1456
        %v1459 = vmul.f32 %v1457, %v1457
        %v1460 = vmul.f32 %v1458, %v1458
        %v1461 = vsel %vm303, %v1459, 0.0
        %1462 = vadd.xlane.f32.xlu0 %v1461
        %v1463 = vpop.xlane.xlu0 %1462
        %v1464 = vsel %vm303, %v1460, 0.0
        %1465 = vadd.xlane.f32.xlu0 %v1464
        %v1466 = vpop.xlane.xlu0 %1465
        %v1467 = vmul.f32 %v1463, %v779
        %v1468 = vmul.f32 %v1466, %v779
        %v1469 = vadd.f32 %v1467, 1e-05
        %v1470 = vadd.f32 %v1468, 1e-05
        %v1471 = vrsqrt.pop %v1469
        %v1472 = vmul.f32 %v1471, %v1469
        %v1473 = vmul.f32 %v1472, %v1471
        %v1474 = vmul.f32 0.5, %v1473
        %v1475 = vsub.f32 1.5, %v1474
        %v1476 = vmul.f32 %v1471, %v1475
        %vm1477 = vweird.f32 %v1469
        %vm1478 = vweird.f32 %v1471
        %vm1479 = vmor %vm1477, %vm1478
        %v1480 = vsel %vm1479, %v1471, %v1476
        %v1481 = vrsqrt.pop %v1470
        %v1482 = vmul.f32 %v1481, %v1470
        %v1483 = vmul.f32 %v1482, %v1481
        %v1484 = vmul.f32 0.5, %v1483
        %v1485 = vsub.f32 1.5, %v1484
        %v1486 = vmul.f32 %v1481, %v1485
        %vm1487 = vweird.f32 %v1470
        %vm1488 = vweird.f32 %v1481
        %vm1489 = vmor %vm1487, %vm1488
        %v1490 = vsel %vm1489, %v1481, %v1486
        %v1491 = vmul.f32 %v1457, %v1480
        %v1492 = vmul.f32 %v1458, %v1490
        %v1493 = vperm.slane %v1447, 0
        %v1494 = vmul.f32 %v1491, %v1493
        %v1495 = vmul.f32 %v1492, %v1493
        %v1496 = vperm.slane %v1448, 0
        %v1497 = vadd.f32 %v1494, %v1496
        %v1498 = vadd.f32 %v1495, %v1496
        %v1499 = vpack.c.bf16 %v1498, %v1497
        %v1500 = vld [vmem:[#allocation2 + $0x58] sm:$0xf]
        %v1501 = vld [vmem:[#allocation2 + $0x5c] sm:$0xf]
        %v1502 = vld [vmem:[#allocation2 + $0x60] sm:$0xf]
        %v1503 = vld [vmem:[#allocation2 + $0x64] sm:$0xf]
        %v1504 = vld [vmem:[#allocation5 + $0xa] sm:$0x1]
        %v1505 = vperm.slane %v1504, 0
        %v1510 = vunpack.c.l.b16 %v1500
        %v1511 = vunpack.c.l.b16 %v1501
        %v1512 = vunpack.c.l.b16 %v1502
        %v1513 = vunpack.c.l.b16 %v1503
        %v1514 = vpack.c.b16 %v1511, %v1510
        %v1515 = vpack.c.b16 %v1513, %v1512
        %v1519 = vsel %vm303, %v1499, 0
        %1521 = vmatpush.bf16.msra.mxu0 0
        %1522 = vmatpush.bf16.msra.mxu0 0
        %1523 = vmatpush.bf16.msra.mxu0 0
        %1524 = vmatpush.bf16.msra.mxu0 0
        %1525 = vmatpush.bf16.msra.mxu0 0
        %1526 = vmatpush.bf16.msra.mxu0 0
        %1527 = vmatpush.bf16.msra.mxu0 %v1515
        %1528 = vmatpush.bf16.msra.mxu0 %v1514
        %1529 = vmatmul.bf16.gmra.mxu0 %v1519
        %v1530 = vpop.f32.mrf.mxu0
        %v1531 = vadd.f32 %v1505, %v1530
        %v1532 = vpop.f32.mrf.mxu0
        %v1533 = vadd.f32 %v1505, %v1532
        %1534 = vdwg.mxu0
        %v1535 = vmax.f32 %v1531, 0.0
        %v1536 = vmax.f32 %v1533, 0.0
        %v1537 = vpack.c.bf16 %v1536, %v1535
        %v1538 = vld [vmem:[#allocation2 + $0x68] sm:$0xf]
        %v1539 = vld [vmem:[#allocation2 + $0x6c] sm:$0xf]
        %v1540 = vld [vmem:[#allocation2 + $0x70] sm:$0xf]
        %v1541 = vld [vmem:[#allocation2 + $0x74] sm:$0xf]
        %v1542 = vld [vmem:[#allocation2 + $0x78] sm:$0xf]
        %v1543 = vld [vmem:[#allocation2 + $0x7c] sm:$0xf]
        %v1544 = vld [vmem:[#allocation2 + $0x80] sm:$0xf]
        %v1545 = vld [vmem:[#allocation2 + $0x84] sm:$0xf]
        %v1546 = vld [vmem:[#allocation5 + $0xb] sm:$0x1]
        %v1547 = vperm.slane %v1546, 0
        %v1556 = vunpack.c.l.b16 %v1538
        %v1557 = vunpack.c.l.b16 %v1539
        %v1558 = vunpack.c.l.b16 %v1540
        %v1559 = vunpack.c.l.b16 %v1541
        %v1560 = vunpack.c.l.b16 %v1542
        %v1561 = vunpack.c.l.b16 %v1543
        %v1562 = vunpack.c.l.b16 %v1544
        %v1563 = vunpack.c.l.b16 %v1545
        %v1564 = vpack.c.b16 %v1557, %v1556
        %v1565 = vpack.c.b16 %v1559, %v1558
        %v1566 = vpack.c.b16 %v1561, %v1560
        %v1567 = vpack.c.b16 %v1563, %v1562
        %v1573 = vsel %vm897, %v1537, 0
        %1575 = vmatpush.bf16.msra.mxu0 0
        %1576 = vmatpush.bf16.msra.mxu0 0
        %1577 = vmatpush.bf16.msra.mxu0 0
        %1578 = vmatpush.bf16.msra.mxu0 0
        %1579 = vmatpush.bf16.msra.mxu0 %v1567
        %1580 = vmatpush.bf16.msra.mxu0 %v1566
        %1581 = vmatpush.bf16.msra.mxu0 %v1565
        %1582 = vmatpush.bf16.msra.mxu0 %v1564
        %1583 = vmatmul.bf16.gmra.mxu0 %v1573
        %v1584 = vpop.f32.mrf.mxu0
        %v1585 = vadd.f32 %v1547, %v1584
        %v1586 = vpop.f32.mrf.mxu0
        %v1587 = vadd.f32 %v1547, %v1586
        %1588 = vdwg.mxu0
        %v1589 = vadd.f32 %v1497, %v1585
        %v1590 = vadd.f32 %v1498, %v1587
        %v1591 = vld [vmem:[#allocation5 + $0xc] sm:$0x1]
        %v1592 = vld [vmem:[#allocation5 + $0xd] sm:$0x1]
        %v1593 = vsel %vm303, %v1589, 0.0
        %1594 = vadd.xlane.f32.xlu0 %v1593
        %v1595 = vpop.xlane.xlu0 %1594
        %v1596 = vsel %vm303, %v1590, 0.0
        %1597 = vadd.xlane.f32.xlu0 %v1596
        %v1598 = vpop.xlane.xlu0 %1597
        %v1599 = vmul.f32 %v1595, %v779
        %v1600 = vmul.f32 %v1598, %v779
        %v1601 = vsub.f32 %v1589, %v1599
        %v1602 = vsub.f32 %v1590, %v1600
        %v1603 = vmul.f32 %v1601, %v1601
        %v1604 = vmul.f32 %v1602, %v1602
        %v1605 = vsel %vm303, %v1603, 0.0
        %1606 = vadd.xlane.f32.xlu0 %v1605
        %v1607 = vpop.xlane.xlu0 %1606
        %v1608 = vsel %vm303, %v1604, 0.0
        %1609 = vadd.xlane.f32.xlu0 %v1608
        %v1610 = vpop.xlane.xlu0 %1609
        %v1611 = vmul.f32 %v1607, %v779
        %v1612 = vmul.f32 %v1610, %v779
        %v1613 = vadd.f32 %v1611, 1e-05
        %v1614 = vadd.f32 %v1612, 1e-05
        %v1615 = vrsqrt.pop %v1613
        %v1616 = vmul.f32 %v1615, %v1613
        %v1617 = vmul.f32 %v1616, %v1615
        %v1618 = vmul.f32 0.5, %v1617
        %v1619 = vsub.f32 1.5, %v1618
        %v1620 = vmul.f32 %v1615, %v1619
        %vm1621 = vweird.f32 %v1613
        %vm1622 = vweird.f32 %v1615
        %vm1623 = vmor %vm1621, %vm1622
        %v1624 = vsel %vm1623, %v1615, %v1620
        %v1625 = vrsqrt.pop %v1614
        %v1626 = vmul.f32 %v1625, %v1614
        %v1627 = vmul.f32 %v1626, %v1625
        %v1628 = vmul.f32 0.5, %v1627
        %v1629 = vsub.f32 1.5, %v1628
        %v1630 = vmul.f32 %v1625, %v1629
        %vm1631 = vweird.f32 %v1614
        %vm1632 = vweird.f32 %v1625
        %vm1633 = vmor %vm1631, %vm1632
        %v1634 = vsel %vm1633, %v1625, %v1630
        %v1635 = vmul.f32 %v1601, %v1624
        %v1636 = vmul.f32 %v1602, %v1634
        %v1637 = vperm.slane %v1591, 0
        %v1638 = vmul.f32 %v1635, %v1637
        %v1639 = vmul.f32 %v1636, %v1637
        %v1640 = vperm.slane %v1592, 0
        %v1641 = vadd.f32 %v1638, %v1640
        %v1642 = vadd.f32 %v1639, %v1640
        %v1643 = vld [vmem:[#allocation5 + $0xe] sm:$0x1]
        %v1644 = vld [vmem:[#allocation5 + $0xf] sm:$0x1]
        %v1645 = vsel %vm303, %v1641, 0.0
        %1646 = vadd.xlane.f32.xlu0 %v1645
        %v1647 = vpop.xlane.xlu0 %1646
        %v1648 = vsel %vm303, %v1642, 0.0
        %1649 = vadd.xlane.f32.xlu0 %v1648
        %v1650 = vpop.xlane.xlu0 %1649
        %v1651 = vmul.f32 %v1647, %v779
        %v1652 = vmul.f32 %v1650, %v779
        %v1653 = vsub.f32 %v1641, %v1651
        %v1654 = vsub.f32 %v1642, %v1652
        %v1655 = vmul.f32 %v1653, %v1653
        %v1656 = vmul.f32 %v1654, %v1654
        %v1657 = vsel %vm303, %v1655, 0.0
        %1658 = vadd.xlane.f32.xlu0 %v1657
        %v1659 = vpop.xlane.xlu0 %1658
        %v1660 = vsel %vm303, %v1656, 0.0
        %1661 = vadd.xlane.f32.xlu0 %v1660
        %v1662 = vpop.xlane.xlu0 %1661
        %v1663 = vmul.f32 %v1659, %v779
        %v1664 = vmul.f32 %v1662, %v779
        %v1665 = vadd.f32 %v1663, 1e-05
        %v1666 = vadd.f32 %v1664, 1e-05
        %v1667 = vrsqrt.pop %v1665
        %v1668 = vmul.f32 %v1667, %v1665
        %v1669 = vmul.f32 %v1668, %v1667
        %v1670 = vmul.f32 0.5, %v1669
        %v1671 = vsub.f32 1.5, %v1670
        %v1672 = vmul.f32 %v1667, %v1671
        %vm1673 = vweird.f32 %v1665
        %vm1674 = vweird.f32 %v1667
        %vm1675 = vmor %vm1673, %vm1674
        %v1676 = vsel %vm1675, %v1667, %v1672
        %v1677 = vrsqrt.pop %v1666
        %v1678 = vmul.f32 %v1677, %v1666
        %v1679 = vmul.f32 %v1678, %v1677
        %v1680 = vmul.f32 0.5, %v1679
        %v1681 = vsub.f32 1.5, %v1680
        %v1682 = vmul.f32 %v1677, %v1681
        %vm1683 = vweird.f32 %v1666
        %vm1684 = vweird.f32 %v1677
        %vm1685 = vmor %vm1683, %vm1684
        %v1686 = vsel %vm1685, %v1677, %v1682
        %v1687 = vmul.f32 %v1653, %v1676
        %v1688 = vmul.f32 %v1654, %v1686
        %v1689 = vperm.slane %v1643, 0
        %v1690 = vmul.f32 %v1687, %v1689
        %v1691 = vmul.f32 %v1688, %v1689
        %v1692 = vperm.slane %v1644, 0
        %v1693 = vadd.f32 %v1690, %v1692
        %v1694 = vadd.f32 %v1691, %v1692
        %v1695 = vpack.c.bf16 %v1694, %v1693
        %v1696 = vld [vmem:[#allocation2 + $0x88] sm:$0xf]
        %v1697 = vld [vmem:[#allocation2 + $0x8c] sm:$0xf]
        %v1698 = vld [vmem:[#allocation2 + $0x90] sm:$0xf]
        %v1699 = vld [vmem:[#allocation2 + $0x94] sm:$0xf]
        %v1700 = vld [vmem:[#allocation5 + $0x10] sm:$0x1]
        %v1701 = vperm.slane %v1700, 0
        %v1706 = vunpack.c.l.b16 %v1696
        %v1707 = vunpack.c.l.b16 %v1697
        %v1708 = vunpack.c.l.b16 %v1698
        %v1709 = vunpack.c.l.b16 %v1699
        %v1710 = vpack.c.b16 %v1707, %v1706
        %v1711 = vpack.c.b16 %v1709, %v1708
        %v1715 = vsel %vm303, %v1695, 0
        %1717 = vmatpush.bf16.msra.mxu0 0
        %1718 = vmatpush.bf16.msra.mxu0 0
        %1719 = vmatpush.bf16.msra.mxu0 0
        %1720 = vmatpush.bf16.msra.mxu0 0
        %1721 = vmatpush.bf16.msra.mxu0 0
        %1722 = vmatpush.bf16.msra.mxu0 0
        %1723 = vmatpush.bf16.msra.mxu0 %v1711
        %1724 = vmatpush.bf16.msra.mxu0 %v1710
        %1725 = vmatmul.bf16.gmra.mxu0 %v1715
        %v1726 = vpop.f32.mrf.mxu0
        %v1727 = vadd.f32 %v1701, %v1726
        %v1728 = vpop.f32.mrf.mxu0
        %v1729 = vadd.f32 %v1701, %v1728
        %1730 = vdwg.mxu0
        %v1731 = vmax.f32 %v1727, 0.0
        %v1732 = vmax.f32 %v1729, 0.0
        %v1733 = vpack.c.bf16 %v1732, %v1731
        %v1734 = vld [vmem:[#allocation2 + $0x98] sm:$0xf]
        %v1735 = vld [vmem:[#allocation2 + $0x9c] sm:$0xf]
        %v1736 = vld [vmem:[#allocation2 + $0xa0] sm:$0xf]
        %v1737 = vld [vmem:[#allocation2 + $0xa4] sm:$0xf]
        %v1738 = vld [vmem:[#allocation2 + $0xa8] sm:$0xf]
        %v1739 = vld [vmem:[#allocation2 + $0xac] sm:$0xf]
        %v1740 = vld [vmem:[#allocation2 + $0xb0] sm:$0xf]
        %v1741 = vld [vmem:[#allocation2 + $0xb4] sm:$0xf]
        %v1742 = vld [vmem:[#allocation5 + $0x11] sm:$0x1]
        %v1743 = vperm.slane %v1742, 0
        %v1752 = vunpack.c.l.b16 %v1734
        %v1753 = vunpack.c.l.b16 %v1735
        %v1754 = vunpack.c.l.b16 %v1736
        %v1755 = vunpack.c.l.b16 %v1737
        %v1756 = vunpack.c.l.b16 %v1738
        %v1757 = vunpack.c.l.b16 %v1739
        %v1758 = vunpack.c.l.b16 %v1740
        %v1759 = vunpack.c.l.b16 %v1741
        %v1760 = vpack.c.b16 %v1753, %v1752
        %v1761 = vpack.c.b16 %v1755, %v1754
        %v1762 = vpack.c.b16 %v1757, %v1756
        %v1763 = vpack.c.b16 %v1759, %v1758
        %v1769 = vsel %vm897, %v1733, 0
        %1771 = vmatpush.bf16.msra.mxu0 0
        %1772 = vmatpush.bf16.msra.mxu0 0
        %1773 = vmatpush.bf16.msra.mxu0 0
        %1774 = vmatpush.bf16.msra.mxu0 0
        %1775 = vmatpush.bf16.msra.mxu0 %v1763
        %1776 = vmatpush.bf16.msra.mxu0 %v1762
        %1777 = vmatpush.bf16.msra.mxu0 %v1761
        %1778 = vmatpush.bf16.msra.mxu0 %v1760
        %1779 = vmatmul.bf16.gmra.mxu0 %v1769
        %v1780 = vpop.f32.mrf.mxu0
        %v1781 = vadd.f32 %v1743, %v1780
        %v1782 = vpop.f32.mrf.mxu0
        %v1783 = vadd.f32 %v1743, %v1782
        %1784 = vdwg.mxu0
        %1785 = vst [vmem:[%s241] sm:$0xff] %v1781
        %1786 = vst [vmem:[%s241 + $0x8] sm:$0xff] %v1783
        %s1787 = sand.u32 %s122, 1
        %s1788 = scalar_lea.sflag [#allocation4], %s1787
        %s1789 = sand.u32 %s122, 1
        %s1790 = smul.addr %s1789, 16
        %s1791 = scalar_lea.vmem [#allocation7], %s1790
        // Predicated region
        $region45: #{tpu_custom_call.1} parent=35 // pred_check
          %p1792 = pneg %p132
        $region46: #{tpu_custom_call.1} parent=35 // pred_check_branch
          %1794 = sbr.rel (%p1792) target = $region48
        $region47: #{tpu_custom_call.1} parent=35 // pred_region
          %s1795 = smul.u32 2, %s20
          %1797 = vsyncadd %s1788, 0
          %s1798 = smul.addr %s1795, 8
          %s1799 = scalar_lea.hbm %s4, %s1798
          %s1800 = sshll.u32 %s1791, 4
          %s1801 = int_to_ptr.vmem [resolvable:$true] %s1800
          %s1802 = sshll.u32 %s1799, 4
          %s1803 = int_to_ptr.hbm [resolvable:$true] %s1802
          %1808 = dma.vmem_to_hbm [thread:$0]  %s1801, 256, %s1803, %s1788, 128, 128, 8
        $region48: #{tpu_custom_call.1} parent=35 // pred_fallthru
          _
      $region36: #{tpu_custom_call.1} parent=5 // pred_fallthru
        _
      %p1809 = scmp.le.s32.totalorder 2, %s15
      // Predicated region
      $region49: #{tpu_custom_call.1} parent=5 // pred_check
        %p1810 = pneg %p1809
      $region50: #{tpu_custom_call.1} parent=5 // pred_check_branch
        %1812 = sbr.rel (%p1810) target = $region52
      $region51: #{tpu_custom_call.1} parent=5 // pred_region
        %s1813 = ssub.s32 %s15, 2
        // Predicated region
        $region53: #{tpu_custom_call.1} parent=51 // pred_check
          %p1814 = pneg %p138
        $region54: #{tpu_custom_call.1} parent=51 // pred_check_branch
          %1816 = sbr.rel (%p1814) target = $region56
        $region55: #{tpu_custom_call.1} parent=51 // pred_region
          %s1817 = sand.u32 %s123, 1
          %s1818 = scalar_lea.sflag [#allocation4], %s1817
          %s1819 = sand.u32 %s123, 1
          %s1820 = smul.addr %s1819, 16
          %s1821 = scalar_lea.vmem [#allocation7], %s1820
          %1823 = dma.done %s1818, 256
        $region56: #{tpu_custom_call.1} parent=51 // pred_fallthru
          _
      $region52: #{tpu_custom_call.1} parent=5 // pred_fallthru
        _
    $region6: #{tpu_custom_call.1} parent=1 // loop_footer
      %s19 = sadd.s32 1, %s15
    $region7: #{tpu_custom_call.1} parent=1 // loop_footer_branch
      %14 = sbr.rel target = $region3
    $region8: #{tpu_custom_call.1} parent=1 // loop_exit
      _
    %1824 = vsyncpa [#allocation3], 1
    %s1825 = scalar_lea.sflag [#allocation3], 1
    %1826 = vsyncpa %s1825, 1
    %1827 = vsyncpa [#allocation6], 1
    %1828 = vsyncpa [#allocation4], 1
    %s1829 = scalar_lea.sflag [#allocation4], 1
    %1830 = vsyncpa %s1829, 1

</llo_original>
